<compile_context>
chip_gen: v7x
topology: tpu7x:2x2x1
jax: 0.10.0
libtpu: 0.0.40
codegen_flags: <defaults>
</compile_context>

<pallas_src>
import functools

import jax
import jax.numpy as jnp
from jax import lax
from jax.experimental import pallas as pl
from jax.experimental.pallas import tpu as pltpu

KSIZE = 7
PAD = KSIZE // 2          # 3
HALO = 2 * PAD            # 6: conv1 halo + conv2 halo per side
EPS = 1e-5
LANES = 128               # lane-dense padded channel count


def _basic_block_kernel(x_ref, w1_ref, w2_ref, wsc_ref, bias_ref, o_ref,
                        *, tl, seq_len):
    """One (batch, L-tile) grid step.

    x_ref   : (1, Lp, Cin)    bf16  full halo-padded sequence of this batch row
                                    (block index constant over L-tiles -> DMA'd
                                    once per batch row, stays resident)
    w1_ref  : (K*Cin, Cp)     bf16  conv1 weight, BN1 scale folded in
    w2_ref  : (K*Cp,  Cp)     bf16  conv2 weight, BN2 scale folded in
    wsc_ref : (Cin,   Cp)     bf16  1x1 shortcut weight, BN_sc scale folded in
    bias_ref: (2,     Cp)     f32   row0 = bn1 bias, row1 = bn2 bias + bn_sc bias
    o_ref   : (1, tl, Cp)     f32
    """
    lt = pl.program_id(1)
    t0 = pl.multiple_of(lt * tl, tl)          # element offset of this tile
    hl = tl + 2 * PAD                         # rows of the h halo window

    # x over original positions [t0 - 6, t0 + tl + 6)  (padded coords [t0, t0+tl+12))
    xwin = x_ref[0, pl.ds(t0, tl + 2 * HALO), :]                  # (tl+12, Cin) bf16

    # ---- conv1 (+ folded BN1 scale): ONE im2col matmul ----------------------
    x_i2c = jnp.concatenate([xwin[k:k + hl, :] for k in range(KSIZE)], axis=-1)
    acc1 = jnp.dot(x_i2c, w1_ref[...], preferred_element_type=jnp.float32)
    h = jnp.maximum(acc1 + bias_ref[0:1, :], 0.0)                 # (hl, Cp) f32

    # conv2's zero padding: halo rows whose original position falls outside
    # [0, seq_len) must be zero (only differs from all-ones on edge tiles).
    u = lax.broadcasted_iota(jnp.int32, (hl, 1), 0)
    pos = t0 + u - PAD
    h = jnp.where(jnp.logical_and(pos >= 0, pos < seq_len), h, 0.0)
    h = h.astype(jnp.bfloat16)

    # ---- conv2 (+ folded BN2 scale): ONE im2col matmul, 7*Cp contraction -----
    h_i2c = jnp.concatenate([h[k:k + tl, :] for k in range(KSIZE)], axis=-1)
    acc2 = jnp.dot(h_i2c, w2_ref[...], preferred_element_type=jnp.float32)

    # ---- 1x1 shortcut (+ folded BN scale) ------------------------------------
    x_mid = xwin[HALO:HALO + tl, :]                               # (tl, Cin) bf16
    sc = jnp.dot(x_mid, wsc_ref[...], preferred_element_type=jnp.float32)

    # ---- residual add + combined bias + ReLU (f32 epilogue) ------------------
    o_ref[0, :, :] = jnp.maximum(acc2 + sc + bias_ref[1:2, :], 0.0)


def fold_bn(p):
    g, b, m, v = p
    s = g / jnp.sqrt(v + EPS)
    return s, b - m * s


def prepare_params(w1_pt, w2_pt, wsc_pt, bn1, bn2, bnsc, lanes=LANES):
    """PyTorch-layout weights -> kernel layout (BN folded, lane-padded, bf16)."""
    cout, cin, k = w1_pt.shape
    cp = ((cout + lanes - 1) // lanes) * lanes
    s1, b1 = fold_bn(bn1)
    s2, b2 = fold_bn(bn2)
    ssc, bsc = fold_bn(bnsc)

    def pad_out(a):  # zero-pad the trailing (Cout) axis to cp
        return jnp.pad(a, [(0, 0)] * (a.ndim - 1) + [(0, cp - cout)])

    # conv1: (Cout,Cin,K) -> (K,Cin,Cout), fold scale, pad, flatten taps.
    w1 = jnp.transpose(w1_pt, (2, 1, 0)) * s1[None, None, :]
    w1 = pad_out(w1).reshape(k * cin, cp)

    # conv2: (Cout,Cout,K) -> (K,Cout,Cout), fold scale, pad both channel axes.
    w2 = jnp.transpose(w2_pt, (2, 1, 0)) * s2[None, None, :]
    w2 = jnp.pad(w2, ((0, 0), (0, cp - cout), (0, cp - cout))).reshape(k * cp, cp)

    # 1x1 shortcut: (Cout,Cin,1) -> (Cin,Cout), fold scale, pad.
    wsc = pad_out(jnp.transpose(wsc_pt[:, :, 0], (1, 0)) * ssc[None, :])

    bias = jnp.stack([pad_out(b1), pad_out(b2 + bsc)], 0).astype(jnp.float32)

    return dict(w1=w1.astype(jnp.bfloat16),
                w2=w2.astype(jnp.bfloat16),
                wsc=wsc.astype(jnp.bfloat16),
                bias=bias, cout=cout)


def basic_block_forward(x_nlc, params, *, tile_l=64,
                        vmem_limit_bytes=48 * 1024 * 1024):
    """x_nlc: (N, L, Cin) float32.  Returns (N, L, Cout) float32.

    tile_l: output rows per grid step (multiple of 8).  Size it to VMEM:
    v5e/v6e (128 MiB) tolerate much larger tiles than v7x (64 MiB); the
    per-tile footprint here is ~ tile_l * Cp * (im2col K + a few) * 2B.
    """
    assert tile_l % 8 == 0
    n, seq_len, cin = x_nlc.shape
    cp = params['w1'].shape[1]
    assert params['w1'].shape[0] == KSIZE * cin

    tl = tile_l
    num_tiles = pl.cdiv(seq_len, tl)
    lt_total = num_tiles * tl
    lp = lt_total + 2 * HALO

    # Single padded copy of x (2*PAD halo per side + round L up to the tile).
    xp = jnp.pad(x_nlc, ((0, 0), (HALO, HALO + lt_total - seq_len), (0, 0)))
    xp = xp.astype(jnp.bfloat16)

    kernel = functools.partial(_basic_block_kernel, tl=tl, seq_len=seq_len)

    out = pl.pallas_call(
        kernel,
        out_shape=jax.ShapeDtypeStruct((n, lt_total, cp), jnp.float32),
        grid=(n, num_tiles),
        in_specs=[
            # per-batch-row sequence: block index does not depend on lt, so it
            # is DMA'd once per batch row and reused across all its L-tiles.
            pl.BlockSpec((1, lp, cin), lambda b, l: (b, 0, 0)),
            pl.BlockSpec((KSIZE * cin, cp), lambda b, l: (0, 0)),
            pl.BlockSpec((KSIZE * cp, cp), lambda b, l: (0, 0)),
            pl.BlockSpec((cin, cp), lambda b, l: (0, 0)),
            pl.BlockSpec((2, cp), lambda b, l: (0, 0)),
        ],
        out_specs=pl.BlockSpec((1, tl, cp), lambda b, l: (b, l, 0)),
        compiler_params=pltpu.CompilerParams(
            dimension_semantics=("parallel", "parallel"),
            vmem_limit_bytes=vmem_limit_bytes),   # safe on v7x's 64 MiB VMEM
    )(xp, params['w1'], params['w2'], params['wsc'], params['bias'])

    return out[:, :seq_len, :params['cout']]


# ---------------- pure-JAX reference (NCL, matches PyTorch semantics) --------
def ref_forward(x_ncl, w1_pt, w2_pt, wsc_pt, bn1, bn2, bnsc):
    dn = ('NCH', 'OIH', 'NCH')

    def conv(x, w, pad):
        return lax.conv_general_dilated(x, w, window_strides=(1,),
                                        padding=[(pad, pad)],
                                        dimension_numbers=dn)

    def bn(x, p):
        g, b, m, v = p
        return (x - m[None, :, None]) / jnp.sqrt(v[None, :, None] + EPS) \
            * g[None, :, None] + b[None, :, None]

    out = jax.nn.relu(bn(conv(x_ncl, w1_pt, PAD), bn1))
    out = bn(conv(out, w2_pt, PAD), bn2)
    sc = bn(conv(x_ncl, wsc_pt, 0), bnsc)
    return jax.nn.relu(out + sc)


if __name__ == "__main__":
    N, Cin, Cout, L = 2, 4, 8, 256

    key = jax.random.PRNGKey(0)
    k1, k2, k3, kx = jax.random.split(key, 4)

    # PyTorch-layout weights: Conv1d weight = (Cout, Cin, K)
    w1_pt = 0.1 * jax.random.normal(k1, (Cout, Cin, KSIZE), jnp.float32)
    w2_pt = 0.1 * jax.random.normal(k2, (Cout, Cout, KSIZE), jnp.float32)
    wsc_pt = 0.1 * jax.random.normal(k3, (Cout, Cin, 1), jnp.float32)

    def bn_params(c, off):
        gamma = 1.0 + 0.1 * jnp.arange(c, dtype=jnp.float32)
        beta = 0.05 * jnp.arange(c, dtype=jnp.float32) + off
        mean = 0.01 * jnp.arange(c, dtype=jnp.float32)
        var = 1.0 + 0.02 * jnp.arange(c, dtype=jnp.float32)
        return gamma, beta, mean, var

    bn1 = bn_params(Cout, 0.0)
    bn2 = bn_params(Cout, 0.1)
    bnsc = bn_params(Cout, -0.1)

    x_ncl = jax.random.normal(kx, (N, Cin, L), jnp.float32)
    x_nlc = jnp.transpose(x_ncl, (0, 2, 1))          # NCL -> NLC for the kernel

    params = prepare_params(w1_pt, w2_pt, wsc_pt, bn1, bn2, bnsc)

    out_nlc = basic_block_forward(x_nlc, params, tile_l=64)
    out_nlc = jax.block_until_ready(out_nlc)

    ref_ncl = jax.block_until_ready(
        ref_forward(x_ncl, w1_pt, w2_pt, wsc_pt, bn1, bn2, bnsc))

    out_ncl = jnp.transpose(out_nlc, (0, 2, 1))
    err = float(jnp.max(jnp.abs(out_ncl - ref_ncl)))
    # MXU operands are bf16 (BN scales folded into the weights); accumulation
    # and the epilogue are f32, so compare with a bf16-level tolerance.
    assert jnp.allclose(out_ncl, ref_ncl, atol=5e-2, rtol=5e-2), err
    print("KERNEL_OK")
</pallas_src>

<mosaic_0001>
module attributes {stable_mosaic.version = 11 : i64} {
  func.func @_basic_block_kernel(%arg0: i32, %arg1: i32, %arg2: memref<1x268x4xbf16, #tpu.memory_space<vmem>>, %arg3: memref<28x128xbf16, #tpu.memory_space<vmem>>, %arg4: memref<896x128xbf16, #tpu.memory_space<vmem>>, %arg5: memref<4x128xbf16, #tpu.memory_space<vmem>>, %arg6: memref<2x128xf32, #tpu.memory_space<vmem>>, %arg7: memref<1x64x128xf32, #tpu.memory_space<vmem>>) attributes {dimension_semantics = [#tpu.dimension_semantics<parallel>, #tpu.dimension_semantics<parallel>], iteration_bounds = array<i64: 2, 4>, scalar_prefetch = 0 : i64, scratch_operands = 0 : i64, tpu.core_type = #tpu.core_type<tc>, window_params = [{transform_indices = @transform_0, window_bounds = array<i64: 1, 268, 4>}, {pipeline_mode = #tpu.pipeline_mode<synchronous>, transform_indices = @transform_1, window_bounds = array<i64: 28, 128>}, {pipeline_mode = #tpu.pipeline_mode<synchronous>, transform_indices = @transform_2, window_bounds = array<i64: 896, 128>}, {pipeline_mode = #tpu.pipeline_mode<synchronous>, transform_indices = @transform_3, window_bounds = array<i64: 4, 128>}, {pipeline_mode = #tpu.pipeline_mode<synchronous>, transform_indices = @transform_4, window_bounds = array<i64: 2, 128>}, {transform_indices = @transform_5, window_bounds = array<i64: 1, 64, 128>}]} {
    %c64_i32 = arith.constant 64 : i32
    %0 = arith.muli %arg1, %c64_i32 : i32
    %1 = tpu.assume_multiple %0, 64 : i32
    %c0 = arith.constant 0 : index
    %2 = arith.index_cast %1 : i32 to index
    %c0_0 = arith.constant 0 : index
    %3 = vector.load %arg2[%c0, %2, %c0_0] : memref<1x268x4xbf16, #tpu.memory_space<vmem>>, vector<1x76x4xbf16>
    %4 = vector.shape_cast %3 : vector<1x76x4xbf16> to vector<76x4xbf16>
    %5 = vector.extract_strided_slice %4 {offsets = [0, 0], sizes = [70, 4], strides = [1, 1]} : vector<76x4xbf16> to vector<70x4xbf16>
    %6 = vector.extract_strided_slice %4 {offsets = [1, 0], sizes = [70, 4], strides = [1, 1]} : vector<76x4xbf16> to vector<70x4xbf16>
    %7 = vector.extract_strided_slice %4 {offsets = [2, 0], sizes = [70, 4], strides = [1, 1]} : vector<76x4xbf16> to vector<70x4xbf16>
    %8 = vector.extract_strided_slice %4 {offsets = [3, 0], sizes = [70, 4], strides = [1, 1]} : vector<76x4xbf16> to vector<70x4xbf16>
    %9 = vector.extract_strided_slice %4 {offsets = [4, 0], sizes = [70, 4], strides = [1, 1]} : vector<76x4xbf16> to vector<70x4xbf16>
    %10 = vector.extract_strided_slice %4 {offsets = [5, 0], sizes = [70, 4], strides = [1, 1]} : vector<76x4xbf16> to vector<70x4xbf16>
    %11 = vector.extract_strided_slice %4 {offsets = [6, 0], sizes = [70, 4], strides = [1, 1]} : vector<76x4xbf16> to vector<70x4xbf16>
    %12 = tpu.concatenate %5, %6, %7, %8, %9, %10, %11 in 1 : vector<70x4xbf16>, vector<70x4xbf16>, vector<70x4xbf16>, vector<70x4xbf16>, vector<70x4xbf16>, vector<70x4xbf16>, vector<70x4xbf16> -> vector<70x28xbf16>
    %c0_1 = arith.constant 0 : index
    %c0_2 = arith.constant 0 : index
    %13 = vector.load %arg3[%c0_1, %c0_2] : memref<28x128xbf16, #tpu.memory_space<vmem>>, vector<28x128xbf16>
    %cst = arith.constant dense<0.000000e+00> : vector<70x128xf32>
    %14 = tpu.matmul %12, %13, %cst {dimension_numbers = #tpu.dot_dimension_numbers<[1], [0], [0], [1], [0, 0, 1, 1], [], []>} : vector<70x28xbf16>, vector<28x128xbf16>, vector<70x128xf32> -> vector<70x128xf32>
    %c0_3 = arith.constant 0 : index
    %c0_4 = arith.constant 0 : index
    %15 = vector.load %arg6[%c0_3, %c0_4] : memref<2x128xf32, #tpu.memory_space<vmem>>, vector<1x128xf32>
    %16 = vector.broadcast %15 : vector<1x128xf32> to vector<70x128xf32>
    %17 = arith.addf %14, %16 : vector<70x128xf32>
    %cst_5 = arith.constant 0.000000e+00 : f32
    %18 = vector.broadcast %cst_5 : f32 to vector<70x128xf32>
    %19 = arith.maximumf %17, %18 : vector<70x128xf32>
    %20 = tpu.iota {dimensions = array<i32: 0>} : vector<70x1xi32>
    %21 = vector.broadcast %1 : i32 to vector<70x1xi32>
    %22 = arith.addi %21, %20 : vector<70x1xi32>
    %c3_i32 = arith.constant 3 : i32
    %23 = vector.broadcast %c3_i32 : i32 to vector<70x1xi32>
    %24 = arith.subi %22, %23 : vector<70x1xi32>
    %c0_i32 = arith.constant 0 : i32
    %25 = vector.broadcast %c0_i32 : i32 to vector<70x1xi32>
    %26 = arith.cmpi sge, %24, %25 : vector<70x1xi32>
    %c256_i32 = arith.constant 256 : i32
    %27 = vector.broadcast %c256_i32 : i32 to vector<70x1xi32>
    %28 = arith.cmpi slt, %24, %27 : vector<70x1xi32>
    %29 = arith.andi %26, %28 : vector<70x1xi1>
    %cst_6 = arith.constant 0.000000e+00 : f32
    %30 = vector.shape_cast %29 : vector<70x1xi1> to vector<70x1xi1>
    %31 = vector.broadcast %30 : vector<70x1xi1> to vector<70x128xi1>
    %32 = vector.broadcast %cst_6 : f32 to vector<70x128xf32>
    %33 = arith.select %31, %19, %32 : vector<70x128xi1>, vector<70x128xf32>
    %34 = arith.truncf %33 : vector<70x128xf32> to vector<70x128xbf16>
    %35 = vector.extract_strided_slice %34 {offsets = [0, 0], sizes = [64, 128], strides = [1, 1]} : vector<70x128xbf16> to vector<64x128xbf16>
    %36 = vector.extract_strided_slice %34 {offsets = [1, 0], sizes = [64, 128], strides = [1, 1]} : vector<70x128xbf16> to vector<64x128xbf16>
    %37 = vector.extract_strided_slice %34 {offsets = [2, 0], sizes = [64, 128], strides = [1, 1]} : vector<70x128xbf16> to vector<64x128xbf16>
    %38 = vector.extract_strided_slice %34 {offsets = [3, 0], sizes = [64, 128], strides = [1, 1]} : vector<70x128xbf16> to vector<64x128xbf16>
    %39 = vector.extract_strided_slice %34 {offsets = [4, 0], sizes = [64, 128], strides = [1, 1]} : vector<70x128xbf16> to vector<64x128xbf16>
    %40 = vector.extract_strided_slice %34 {offsets = [5, 0], sizes = [64, 128], strides = [1, 1]} : vector<70x128xbf16> to vector<64x128xbf16>
    %41 = vector.extract_strided_slice %34 {offsets = [6, 0], sizes = [64, 128], strides = [1, 1]} : vector<70x128xbf16> to vector<64x128xbf16>
    %42 = tpu.concatenate %35, %36, %37, %38, %39, %40, %41 in 1 : vector<64x128xbf16>, vector<64x128xbf16>, vector<64x128xbf16>, vector<64x128xbf16>, vector<64x128xbf16>, vector<64x128xbf16>, vector<64x128xbf16> -> vector<64x896xbf16>
    %c0_7 = arith.constant 0 : index
    %c0_8 = arith.constant 0 : index
    %43 = vector.load %arg4[%c0_7, %c0_8] : memref<896x128xbf16, #tpu.memory_space<vmem>>, vector<896x128xbf16>
    %cst_9 = arith.constant dense<0.000000e+00> : vector<64x128xf32>
    %44 = tpu.matmul %42, %43, %cst_9 {dimension_numbers = #tpu.dot_dimension_numbers<[1], [0], [0], [1], [0, 0, 1, 1], [], []>} : vector<64x896xbf16>, vector<896x128xbf16>, vector<64x128xf32> -> vector<64x128xf32>
    %45 = vector.extract_strided_slice %4 {offsets = [6, 0], sizes = [64, 4], strides = [1, 1]} : vector<76x4xbf16> to vector<64x4xbf16>
    %c0_10 = arith.constant 0 : index
    %c0_11 = arith.constant 0 : index
    %46 = vector.load %arg5[%c0_10, %c0_11] : memref<4x128xbf16, #tpu.memory_space<vmem>>, vector<4x128xbf16>
    %cst_12 = arith.constant dense<0.000000e+00> : vector<64x128xf32>
    %47 = tpu.matmul %45, %46, %cst_12 {dimension_numbers = #tpu.dot_dimension_numbers<[1], [0], [0], [1], [0, 0, 1, 1], [], []>} : vector<64x4xbf16>, vector<4x128xbf16>, vector<64x128xf32> -> vector<64x128xf32>
    %48 = arith.addf %44, %47 : vector<64x128xf32>
    %c1 = arith.constant 1 : index
    %c0_13 = arith.constant 0 : index
    %49 = vector.load %arg6[%c1, %c0_13] : memref<2x128xf32, #tpu.memory_space<vmem>>, vector<1x128xf32>
    %50 = vector.broadcast %49 : vector<1x128xf32> to vector<64x128xf32>
    %51 = arith.addf %48, %50 : vector<64x128xf32>
    %cst_14 = arith.constant 0.000000e+00 : f32
    %52 = vector.broadcast %cst_14 : f32 to vector<64x128xf32>
    %53 = arith.maximumf %51, %52 : vector<64x128xf32>
    %c0_15 = arith.constant 0 : index
    %c0_16 = arith.constant 0 : index
    %c0_17 = arith.constant 0 : index
    %54 = vector.load %arg7[%c0_15, %c0_16, %c0_17] : memref<1x64x128xf32, #tpu.memory_space<vmem>>, vector<1x64x128xf32>
    %55 = vector.shape_cast %54 : vector<1x64x128xf32> to vector<64x128xf32>
    %56 = vector.shape_cast %53 : vector<64x128xf32> to vector<1x64x128xf32>
    tpu.vector_store %arg7[%c0_15, %c0_16, %c0_17], %56 {strides = array<i32>} : memref<1x64x128xf32, #tpu.memory_space<vmem>>, vector<1x64x128xf32>,
    return
  }
  func.func @transform_0(%arg0: i32, %arg1: i32) -> (i32, i32, i32) {
    %c0_i32 = arith.constant 0 : i32
    %c0_i32_0 = arith.constant 0 : i32
    %c0_i32_1 = arith.constant 0 : i32
    return %arg0, %c0_i32, %c0_i32_0 : i32, i32, i32
  }
  func.func @transform_1(%arg0: i32, %arg1: i32) -> (i32, i32) {
    %c0_i32 = arith.constant 0 : i32
    %c0_i32_0 = arith.constant 0 : i32
    %c0_i32_1 = arith.constant 0 : i32
    return %c0_i32, %c0_i32_0 : i32, i32
  }
  func.func @transform_2(%arg0: i32, %arg1: i32) -> (i32, i32) {
    %c0_i32 = arith.constant 0 : i32
    %c0_i32_0 = arith.constant 0 : i32
    %c0_i32_1 = arith.constant 0 : i32
    return %c0_i32, %c0_i32_0 : i32, i32
  }
  func.func @transform_3(%arg0: i32, %arg1: i32) -> (i32, i32) {
    %c0_i32 = arith.constant 0 : i32
    %c0_i32_0 = arith.constant 0 : i32
    %c0_i32_1 = arith.constant 0 : i32
    return %c0_i32, %c0_i32_0 : i32, i32
  }
  func.func @transform_4(%arg0: i32, %arg1: i32) -> (i32, i32) {
    %c0_i32 = arith.constant 0 : i32
    %c0_i32_0 = arith.constant 0 : i32
    %c0_i32_1 = arith.constant 0 : i32
    return %c0_i32, %c0_i32_0 : i32, i32
  }
  func.func @transform_5(%arg0: i32, %arg1: i32) -> (i32, i32, i32) {
    %c0_i32 = arith.constant 0 : i32
    %c0_i32_0 = arith.constant 0 : i32
    return %arg0, %arg1, %c0_i32 : i32, i32, i32
  }
}

</mosaic_0001>

<llo_original>
// kernel: tpu_custom_call.1
$region0: #{tpu_custom_call.1}
  #allocation0 [shape = 'u32[]', space=smem, size = 0x4, offset = 0x4, fixed_abs, tag = 'smem constant byte address 0x4 - core index']
  #allocation1 [shape = 'u32[144,128]{1,0:T(1,128)}', space=vmem, size = 0x12000, scoped, tag = 'internal scratch']
  %s0 = inlined_call_operand.vmem [shape: bf16[2,268,4], index: 0, kind: input, shape index: {}]
  %s1 = inlined_call_operand.vmem [shape: bf16[28,128], index: 1, kind: input, shape index: {}]
  %s2 = inlined_call_operand.hbm [shape: bf16[896,128], index: 2, kind: input, shape index: {}]
  %s3 = inlined_call_operand.vmem [shape: bf16[4,128], index: 3, kind: input, shape index: {}]
  %s4 = inlined_call_operand.vmem [shape: f32[2,128], index: 4, kind: input, shape index: {}]
  %s5 = inlined_call_operand.hbm [shape: f32[2,256,128], index: 5, kind: output, shape index: {}]
  %s6 = sld [smem:[#allocation0]]
  $region57: #{tpu_custom_call.1} parent=0
    _
  %s8 = ssub.s32 1, %s6
  %s9 = scalar_select 0, %s8, %s6
  $region1: #{tpu_custom_call.1} parent=0
    #allocation2 [shape = 'u8[229376]{0}', space=vmem, size = 0x38000, scoped, tag = 'input window, operand 2, single buffered']
    #allocation3 [shape = 's32[2]{0}', space=sflag, size = 0x8, scoped, tag = 'scoped memory for tpu_custom_call.1']
    #allocation4 [shape = 's32[2]{0}', space=sflag, size = 0x8, scoped, tag = 'scoped memory for tpu_custom_call.1']
    #allocation5 [shape = 'u8[65536]{0}', space=vmem, size = 0x10000, scoped, tag = 'output window, operand 0']
    %10 = vsyncpa [#allocation3], 0
    %11 = vsyncpa [#allocation4], 0
    %s12 = scalar_lea.sflag [#allocation4], 1
    %13 = vsyncpa %s12, 0
    loop: start=0, step=1, limit=10
    $region2: #{tpu_custom_call.1} parent=1 // loop_pre_header
      _
    $region3: #{tpu_custom_call.1} parent=1 // loop_header
      %s15 = sphi 0, %s19
      %p16 = scmp.ge.s32.totalorder %s15, 10
      %s22 = sphi 0, %s34
      %s23 = sphi 0, %s30
      %s24 = sphi 0, %s22
      %s25 = sphi 0, %s23
      %s26 = sphi 0, %s24
      %s27 = sphi 0, %s25
      %s37 = sphi 0, %s39
      %s40 = sphi 0, %s37
      %s41 = sphi 0, %s40
      %s57 = sphi 0, %s41
      %s61 = sphi 0, %s61
      %s63 = sphi 0, %s61
      %s64 = sphi 0, %s63
      %s78 = sphi 0, %s64
      %s82 = sphi 0, %s82
      %s84 = sphi 0, %s82
      %s85 = sphi 0, %s84
      %s99 = sphi 0, %s85
      %s103 = sphi 0, %s103
      %s105 = sphi 0, %s103
      %s106 = sphi 0, %s105
      %s120 = sphi 0, %s106
      %s124 = sphi 0, %s124
      %s126 = sphi 0, %s124
      %s127 = sphi 0, %s126
      %s141 = sphi 0, %s127
      %s149 = sphi 0, %s151
      %s152 = sphi 0, %s149
      %s153 = sphi 0, %s152
      %s169 = sphi 0, %s153
    $region4: #{tpu_custom_call.1} parent=1 // loop_header_branch
      %18 = sbr.rel (%p16) target = $region8
    $region5: #{tpu_custom_call.1} parent=1 // loop_body
      %s20 = ssub.s32 %s15, 1
      %s21 = ssub.s32 %s15, 2
      %s28 = sadd.s32 1, %s23
      %p29 = scmp.ge.s32.totalorder %s28, 4
      %s30 = scalar_select %p29, 0, %s28
      %s31 = sadd.s32 1, %s22
      %s32 = scalar_select %p29, %s31, %s22
      %p33 = scmp.ge.s32.totalorder %s32, 2
      %s34 = scalar_select %p33, 0, %s32
      %s35 = ssub.s32 %s22, %s34
      %p36 = scmp.eq.s32.totalorder %s35, 0
      %s38 = sadd.s32 %s37, 1
      %s39 = scalar_select %p36, %s37, %s38
      %p42 = pneg %p36
      %p43 = scmp.eq.s32.totalorder %s15, 7
      %p44 = por %p42, %p43
      %p45 = scmp.ne.s32.totalorder %s37, %s40
      %p46 = scmp.eq.s32.totalorder %s15, 0
      %p47 = por %p45, %p46
      %p48 = scmp.ne.s32.totalorder %s37, %s40
      %p49 = scmp.eq.s32.totalorder %s20, 7
      %p50 = por %p48, %p49
      %p51 = scmp.ne.s32.totalorder %s40, %s41
      %p52 = scmp.eq.s32.totalorder %s20, 0
      %p53 = por %p51, %p52
      %p54 = scmp.ne.s32.totalorder %s40, %s41
      %p55 = scmp.eq.s32.totalorder %s21, 7
      %p56 = por %p54, %p55
      %p58 = scmp.ne.s32.totalorder %s41, %s57
      %p59 = scmp.eq.s32.totalorder %s21, 0
      %p60 = por %p58, %p59
      %s62 = sadd.s32 %s61, 1
      %p65 = scmp.eq.s32.totalorder %s15, 7
      %p66 = scmp.ne.s32.totalorder %s61, %s63
      %p67 = scmp.eq.s32.totalorder %s15, 0
      %p68 = por %p66, %p67
      %p69 = scmp.ne.s32.totalorder %s61, %s63
      %p70 = scmp.eq.s32.totalorder %s20, 7
      %p71 = por %p69, %p70
      %p72 = scmp.ne.s32.totalorder %s63, %s64
      %p73 = scmp.eq.s32.totalorder %s20, 0
      %p74 = por %p72, %p73
      %p75 = scmp.ne.s32.totalorder %s63, %s64
      %p76 = scmp.eq.s32.totalorder %s21, 7
      %p77 = por %p75, %p76
      %p79 = scmp.ne.s32.totalorder %s64, %s78
      %p80 = scmp.eq.s32.totalorder %s21, 0
      %p81 = por %p79, %p80
      %s83 = sadd.s32 %s82, 1
      %p86 = scmp.eq.s32.totalorder %s15, 7
      %p87 = scmp.ne.s32.totalorder %s82, %s84
      %p88 = scmp.eq.s32.totalorder %s15, 0
      %p89 = por %p87, %p88
      %p90 = scmp.ne.s32.totalorder %s82, %s84
      %p91 = scmp.eq.s32.totalorder %s20, 7
      %p92 = por %p90, %p91
      %p93 = scmp.ne.s32.totalorder %s84, %s85
      %p94 = scmp.eq.s32.totalorder %s20, 0
      %p95 = por %p93, %p94
      %p96 = scmp.ne.s32.totalorder %s84, %s85
      %p97 = scmp.eq.s32.totalorder %s21, 7
      %p98 = por %p96, %p97
      %p100 = scmp.ne.s32.totalorder %s85, %s99
      %p101 = scmp.eq.s32.totalorder %s21, 0
      %p102 = por %p100, %p101
      %s104 = sadd.s32 %s103, 1
      %p107 = scmp.eq.s32.totalorder %s15, 7
      %p108 = scmp.ne.s32.totalorder %s103, %s105
      %p109 = scmp.eq.s32.totalorder %s15, 0
      %p110 = por %p108, %p109
      %p111 = scmp.ne.s32.totalorder %s103, %s105
      %p112 = scmp.eq.s32.totalorder %s20, 7
      %p113 = por %p111, %p112
      %p114 = scmp.ne.s32.totalorder %s105, %s106
      %p115 = scmp.eq.s32.totalorder %s20, 0
      %p116 = por %p114, %p115
      %p117 = scmp.ne.s32.totalorder %s105, %s106
      %p118 = scmp.eq.s32.totalorder %s21, 7
      %p119 = por %p117, %p118
      %p121 = scmp.ne.s32.totalorder %s106, %s120
      %p122 = scmp.eq.s32.totalorder %s21, 0
      %p123 = por %p121, %p122
      %s125 = sadd.s32 %s124, 1
      %p128 = scmp.eq.s32.totalorder %s15, 7
      %p129 = scmp.ne.s32.totalorder %s124, %s126
      %p130 = scmp.eq.s32.totalorder %s15, 0
      %p131 = por %p129, %p130
      %p132 = scmp.ne.s32.totalorder %s124, %s126
      %p133 = scmp.eq.s32.totalorder %s20, 7
      %p134 = por %p132, %p133
      %p135 = scmp.ne.s32.totalorder %s126, %s127
      %p136 = scmp.eq.s32.totalorder %s20, 0
      %p137 = por %p135, %p136
      %p138 = scmp.ne.s32.totalorder %s126, %s127
      %p139 = scmp.eq.s32.totalorder %s21, 7
      %p140 = por %p138, %p139
      %p142 = scmp.ne.s32.totalorder %s127, %s141
      %p143 = scmp.eq.s32.totalorder %s21, 0
      %p144 = por %p142, %p143
      %s145 = ssub.s32 %s22, %s34
      %s146 = ssub.s32 %s23, %s30
      %s147 = sor.u32 %s145, %s146
      %p148 = scmp.eq.s32.totalorder %s147, 0
      %s150 = sadd.s32 %s149, 1
      %s151 = scalar_select %p148, %s149, %s150
      %p154 = pneg %p148
      %p155 = scmp.eq.s32.totalorder %s15, 7
      %p156 = por %p154, %p155
      %p157 = scmp.ne.s32.totalorder %s149, %s152
      %p158 = scmp.eq.s32.totalorder %s15, 0
      %p159 = por %p157, %p158
      %p160 = scmp.ne.s32.totalorder %s149, %s152
      %p161 = scmp.eq.s32.totalorder %s20, 7
      %p162 = por %p160, %p161
      %p163 = scmp.ne.s32.totalorder %s152, %s153
      %p164 = scmp.eq.s32.totalorder %s20, 0
      %p165 = por %p163, %p164
      %p166 = scmp.ne.s32.totalorder %s152, %s153
      %p167 = scmp.eq.s32.totalorder %s21, 7
      %p168 = por %p166, %p167
      %p170 = scmp.ne.s32.totalorder %s153, %s169
      %p171 = scmp.eq.s32.totalorder %s21, 0
      %p172 = por %p170, %p171
      %p173 = scmp.le.s32.totalorder 1, %s15
      %p174 = scmp.lt.s32.totalorder %s15, 9
      %p175 = pnand %p173, %p174
      %p176 = pneg %p175
      // Predicated region
      $region9: #{tpu_custom_call.1} parent=5 // pred_check
        _
      $region10: #{tpu_custom_call.1} parent=5 // pred_check_branch
        %178 = sbr.rel (%p175) target = $region12
      $region11: #{tpu_custom_call.1} parent=5 // pred_region
        %s179 = ssub.s32 %s15, 1
        // Predicated region
        $region13: #{tpu_custom_call.1} parent=11 // pred_check
          %p180 = pneg %p74
        $region14: #{tpu_custom_call.1} parent=11 // pred_check_branch
          %182 = sbr.rel (%p180) target = $region16
        $region15: #{tpu_custom_call.1} parent=11 // pred_region
          _
        $region16: #{tpu_custom_call.1} parent=11 // pred_fallthru
          _
        // Predicated region
        $region17: #{tpu_custom_call.1} parent=11 // pred_check
          %p183 = pneg %p95
        $region18: #{tpu_custom_call.1} parent=11 // pred_check_branch
          %185 = sbr.rel (%p183) target = $region20
        $region19: #{tpu_custom_call.1} parent=11 // pred_region
          %s187 = ssub.s32 7168, 7168
          %188 = vsyncadd [#allocation3], %s187
          %s189 = sshll.u32 [#allocation2], 4
          %s190 = int_to_ptr.vmem [resolvable:$true] %s189
          %195 = dma.hbm_to_vmem [thread:$0]  %s2, 7168, %s190, [#allocation3], 64, 64, 4
        $region20: #{tpu_custom_call.1} parent=11 // pred_fallthru
          _
        // Predicated region
        $region21: #{tpu_custom_call.1} parent=11 // pred_check
          %p196 = pneg %p116
        $region22: #{tpu_custom_call.1} parent=11 // pred_check_branch
          %198 = sbr.rel (%p196) target = $region24
        $region23: #{tpu_custom_call.1} parent=11 // pred_region
          _
        $region24: #{tpu_custom_call.1} parent=11 // pred_fallthru
          _
        // Predicated region
        $region25: #{tpu_custom_call.1} parent=11 // pred_check
          %p199 = pneg %p137
        $region26: #{tpu_custom_call.1} parent=11 // pred_check_branch
          %201 = sbr.rel (%p199) target = $region28
        $region27: #{tpu_custom_call.1} parent=11 // pred_region
          _
        $region28: #{tpu_custom_call.1} parent=11 // pred_fallthru
          _
      $region12: #{tpu_custom_call.1} parent=5 // pred_fallthru
        _
      %p202 = scmp.lt.s32.totalorder %s15, 8
      // Predicated region
      $region29: #{tpu_custom_call.1} parent=5 // pred_check
        %p203 = pneg %p202
      $region30: #{tpu_custom_call.1} parent=5 // pred_check_branch
        %205 = sbr.rel (%p203) target = $region32
      $region31: #{tpu_custom_call.1} parent=5 // pred_region
        // Predicated region
        $region33: #{tpu_custom_call.1} parent=31 // pred_check
          %p206 = pneg %p47
        $region34: #{tpu_custom_call.1} parent=31 // pred_check_branch
          %208 = sbr.rel (%p206) target = $region36
        $region35: #{tpu_custom_call.1} parent=31 // pred_region
          %p209 = scmp.lt.s32.totalorder %s22, 1
          %s210 = scalar_select %p209, %s22, 1
          %s211 = smul.addr %s210, 34
          %s212 = smul.addr %s211, 4
          %s213 = scalar_lea.vmem %s0, %s212
        $region36: #{tpu_custom_call.1} parent=31 // pred_fallthru
          _
      $region32: #{tpu_custom_call.1} parent=5 // pred_fallthru
        _
      %p214 = scmp.le.s32.totalorder 1, %s15
      %p215 = scmp.lt.s32.totalorder %s15, 9
      %p216 = pnand %p214, %p215
      %p217 = pneg %p216
      // Predicated region
      $region37: #{tpu_custom_call.1} parent=5 // pred_check
        _
      $region38: #{tpu_custom_call.1} parent=5 // pred_check_branch
        %219 = sbr.rel (%p216) target = $region40
      $region39: #{tpu_custom_call.1} parent=5 // pred_region
        %s220 = ssub.s32 %s15, 1
        // Predicated region
        $region41: #{tpu_custom_call.1} parent=39 // pred_check
          %p221 = pneg %p95
        $region42: #{tpu_custom_call.1} parent=39 // pred_check_branch
          %223 = sbr.rel (%p221) target = $region44
        $region43: #{tpu_custom_call.1} parent=39 // pred_region
          %224 = dma.done [#allocation3], 7168
        $region44: #{tpu_custom_call.1} parent=39 // pred_fallthru
          _
        %p225 = scmp.lt.s32.totalorder %s24, 1
        %s226 = scalar_select %p225, %s24, 1
        %s227 = smul.addr %s226, 34
        %s228 = smul.addr %s227, 4
        %s229 = scalar_lea.vmem %s0, %s228
        %p230 = pneg %p53
        %p231 = pneg %p50
        %p232 = pneg %p74
        %p233 = pneg %p71
        %p234 = pneg %p95
        %p235 = pneg %p92
        %p236 = pneg %p116
        %p237 = pneg %p113
        %p238 = pneg %p137
        %p239 = pneg %p134
        %p240 = pneg %p165
        %p241 = pneg %p162
        %s242 = sand.u32 %s152, 1
        %s243 = scalar_lea.sflag [#allocation4], %s242
        %s244 = sand.u32 %s152, 1
        %s245 = smul.addr %s244, 64
        %s246 = scalar_lea.vmem [#allocation5], %s245
        %p247 = scmp.lt.s32.totalorder %s24, 1
        %s248 = scalar_select %p247, %s24, 1
        %s249 = smul.addr %s248, 34
        %s250 = smul.addr %s249, 4
        %s251 = scalar_lea.vmem %s0, %s250
        %s252 = smul.u32 8, %s25
        %s254 = smul.u32 %s25, 64
        %s255 = sshra.s32 %s254, 3
        %s256 = sand.u32 %s254, 7
        %s257 = smul.addr %s255, 4
        %s258 = scalar_lea.vmem %s251, %s257
        %v259 = vld [vmem:[%s258] sm:$0xf]
        %v260 = vld [vmem:[%s258 + $0x4] sm:$0xf]
        %v261 = vld [vmem:[%s258 + $0x8] sm:$0xf]
        %v262 = vld [vmem:[%s258 + $0xc] sm:$0xf]
        %v263 = vld [vmem:[%s258 + $0x10] sm:$0xf]
        %v264 = vld [vmem:[%s258 + $0x14] sm:$0xf]
        %v265 = vld [vmem:[%s258 + $0x18] sm:$0xf]
        %v266 = vld [vmem:[%s258 + $0x1c] sm:$0xf]
        %v267 = vld [vmem:[%s258 + $0x20] sm:$0xf]
        %v268 = vld [vmem:[%s258 + $0x24] sm:$0x3]
        %v278 = vunpack.c.l.b16 %v259
        %v279 = vunpack.c.l.b16 %v260
        %v280 = vunpack.c.l.b16 %v261
        %v281 = vunpack.c.l.b16 %v262
        %v282 = vunpack.c.l.b16 %v263
        %v283 = vunpack.c.l.b16 %v264
        %v284 = vunpack.c.l.b16 %v265
        %v285 = vunpack.c.l.b16 %v266
        %v286 = vunpack.c.l.b16 %v267
        %v287 = vpack.c.b16 %v279, %v278
        %v288 = vpack.c.b16 %v281, %v280
        %v289 = vpack.c.b16 %v283, %v282
        %v290 = vpack.c.b16 %v285, %v284
        %v291 = vpack.c.b16 %v286, %v286
        %vm292 = vsmask.f32 7424
        %v294 = vshrl.u32 %v287, 16
        %v296 = vshll.u32 %v287, 16
        %v298 = vrot.slane %v296, 1
        %v299 = vor.u32 %v294, %v298
        %v301 = vshll.u32 %v288, 16
        %v303 = vrot.slane %v301, 1
        %v304 = vsel %vm292, %v299, %v303
        %v305 = vshrl.u32 %v288, 16
        %v307 = vor.u32 %v305, %v303
        %v309 = vshll.u32 %v289, 16
        %v311 = vrot.slane %v309, 1
        %v312 = vsel %vm292, %v307, %v311
        %v313 = vshrl.u32 %v289, 16
        %v315 = vor.u32 %v313, %v311
        %v317 = vshll.u32 %v290, 16
        %v319 = vrot.slane %v317, 1
        %v320 = vsel %vm292, %v315, %v319
        %v321 = vshrl.u32 %v290, 16
        %v323 = vor.u32 %v321, %v319
        %v325 = vshll.u32 %v291, 16
        %v327 = vrot.slane %v325, 1
        %v328 = vsel %vm292, %v323, %v327
        %v329 = vshrl.u32 %v291, 16
        %v331 = vor.u32 %v329, %v327
        %332 = vrot.lane.b32.xlu0 %v304, 4
        %v333 = vpop.permute.xlu0 %332
        %334 = vrot.lane.b32.xlu0 %v312, 4
        %v335 = vpop.permute.xlu0 %334
        %336 = vrot.lane.b32.xlu0 %v320, 4
        %v337 = vpop.permute.xlu0 %336
        %338 = vrot.lane.b32.xlu0 %v328, 4
        %v339 = vpop.permute.xlu0 %338
        %340 = vrot.lane.b32.xlu0 %v331, 4
        %v341 = vpop.permute.xlu0 %340
        %vm342 = vcmask 1046528
        %v343 = vrot.slane %v287, 1
        %v344 = vrot.slane %v288, 1
        %v345 = vsel %vm342, %v343, %v344
        %v346 = vrot.slane %v289, 1
        %v347 = vsel %vm342, %v344, %v346
        %v348 = vrot.slane %v290, 1
        %v349 = vsel %vm342, %v346, %v348
        %v350 = vrot.slane %v291, 1
        %v351 = vsel %vm342, %v348, %v350
        %352 = vrot.lane.b32.xlu0 %v345, 8
        %v353 = vpop.permute.xlu0 %352
        %354 = vrot.lane.b32.xlu0 %v347, 8
        %v355 = vpop.permute.xlu0 %354
        %356 = vrot.lane.b32.xlu0 %v349, 8
        %v357 = vpop.permute.xlu0 %356
        %358 = vrot.lane.b32.xlu0 %v351, 8
        %v359 = vpop.permute.xlu0 %358
        %360 = vrot.lane.b32.xlu0 %v350, 8
        %v361 = vpop.permute.xlu0 %360
        %v363 = vunpack.c.l.b16 %v268
        %v364 = vpack.c.b16 %v363, %v286
        %vm365 = vsmask.f32 6400
        %v366 = vrot.slane %v294, 1
        %v367 = vrot.slane %v296, 2
        %v368 = vor.u32 %v366, %v367
        %v369 = vrot.slane %v305, 1
        %v370 = vrot.slane %v301, 2
        %v371 = vor.u32 %v369, %v370
        %v372 = vsel %vm365, %v368, %v371
        %v373 = vrot.slane %v313, 1
        %v374 = vrot.slane %v309, 2
        %v375 = vor.u32 %v373, %v374
        %v376 = vsel %vm365, %v371, %v375
        %v377 = vrot.slane %v321, 1
        %v378 = vrot.slane %v317, 2
        %v379 = vor.u32 %v377, %v378
        %v380 = vsel %vm365, %v375, %v379
        %v382 = vshrl.u32 %v364, 16
        %v384 = vrot.slane %v382, 1
        %v385 = vshll.u32 %v364, 16
        %v387 = vrot.slane %v385, 2
        %v388 = vor.u32 %v384, %v387
        %v389 = vsel %vm365, %v379, %v388
        %390 = vrot.lane.b32.xlu0 %v372, 12
        %v391 = vpop.permute.xlu0 %390
        %392 = vrot.lane.b32.xlu0 %v376, 12
        %v393 = vpop.permute.xlu0 %392
        %394 = vrot.lane.b32.xlu0 %v380, 12
        %v395 = vpop.permute.xlu0 %394
        %396 = vrot.lane.b32.xlu0 %v389, 12
        %v397 = vpop.permute.xlu0 %396
        %398 = vrot.lane.b32.xlu0 %v388, 12
        %v399 = vpop.permute.xlu0 %398
        %vm400 = vcmask 1045504
        %v401 = vrot.slane %v287, 2
        %v402 = vrot.slane %v288, 2
        %v403 = vsel %vm400, %v401, %v402
        %v404 = vrot.slane %v289, 2
        %v405 = vsel %vm400, %v402, %v404
        %v406 = vrot.slane %v290, 2
        %v407 = vsel %vm400, %v404, %v406
        %v408 = vrot.slane %v364, 2
        %v409 = vsel %vm400, %v406, %v408
        %410 = vrot.lane.b32.xlu0 %v403, 16
        %v411 = vpop.permute.xlu0 %410
        %412 = vrot.lane.b32.xlu0 %v405, 16
        %v413 = vpop.permute.xlu0 %412
        %414 = vrot.lane.b32.xlu0 %v407, 16
        %v415 = vpop.permute.xlu0 %414
        %416 = vrot.lane.b32.xlu0 %v409, 16
        %v417 = vpop.permute.xlu0 %416
        %418 = vrot.lane.b32.xlu0 %v408, 16
        %v419 = vpop.permute.xlu0 %418
        %vm420 = vsmask.f32 5376
        %v421 = vrot.slane %v294, 2
        %v422 = vrot.slane %v296, 3
        %v423 = vor.u32 %v421, %v422
        %v424 = vrot.slane %v305, 2
        %v425 = vrot.slane %v301, 3
        %v426 = vor.u32 %v424, %v425
        %v427 = vsel %vm420, %v423, %v426
        %v428 = vrot.slane %v313, 2
        %v429 = vrot.slane %v309, 3
        %v430 = vor.u32 %v428, %v429
        %v431 = vsel %vm420, %v426, %v430
        %v432 = vrot.slane %v321, 2
        %v433 = vrot.slane %v317, 3
        %v434 = vor.u32 %v432, %v433
        %v435 = vsel %vm420, %v430, %v434
        %v436 = vrot.slane %v382, 2
        %v437 = vrot.slane %v385, 3
        %v438 = vor.u32 %v436, %v437
        %v439 = vsel %vm420, %v434, %v438
        %440 = vrot.lane.b32.xlu0 %v427, 20
        %v441 = vpop.permute.xlu0 %440
        %442 = vrot.lane.b32.xlu0 %v431, 20
        %v443 = vpop.permute.xlu0 %442
        %444 = vrot.lane.b32.xlu0 %v435, 20
        %v445 = vpop.permute.xlu0 %444
        %446 = vrot.lane.b32.xlu0 %v439, 20
        %v447 = vpop.permute.xlu0 %446
        %448 = vrot.lane.b32.xlu0 %v438, 20
        %v449 = vpop.permute.xlu0 %448
        %vm450 = vcmask 1044480
        %v451 = vrot.slane %v287, 3
        %v452 = vrot.slane %v288, 3
        %v453 = vsel %vm450, %v451, %v452
        %v454 = vrot.slane %v289, 3
        %v455 = vsel %vm450, %v452, %v454
        %v456 = vrot.slane %v290, 3
        %v457 = vsel %vm450, %v454, %v456
        %v458 = vrot.slane %v364, 3
        %v459 = vsel %vm450, %v456, %v458
        %460 = vrot.lane.b32.xlu0 %v453, 24
        %v461 = vpop.permute.xlu0 %460
        %462 = vrot.lane.b32.xlu0 %v455, 24
        %v463 = vpop.permute.xlu0 %462
        %464 = vrot.lane.b32.xlu0 %v457, 24
        %v465 = vpop.permute.xlu0 %464
        %466 = vrot.lane.b32.xlu0 %v459, 24
        %v467 = vpop.permute.xlu0 %466
        %468 = vrot.lane.b32.xlu0 %v458, 24
        %v469 = vpop.permute.xlu0 %468
        %vm470 = vcmask 31744
        %v472 = vsel %vm470, %v287, %v333
        %v474 = vsel %vm470, %v288, %v335
        %v476 = vsel %vm470, %v289, %v337
        %v478 = vsel %vm470, %v290, %v339
        %v480 = vsel %vm470, %v291, %v341
        %vm481 = vcmask 64512
        %v483 = vsel %vm481, %v472, %v353
        %v485 = vsel %vm481, %v474, %v355
        %v487 = vsel %vm481, %v476, %v357
        %v489 = vsel %vm481, %v478, %v359
        %v491 = vsel %vm481, %v480, %v361
        %vm492 = vcmask 97280
        %v494 = vsel %vm492, %v483, %v391
        %v496 = vsel %vm492, %v485, %v393
        %v498 = vsel %vm492, %v487, %v395
        %v500 = vsel %vm492, %v489, %v397
        %v502 = vsel %vm492, %v491, %v399
        %vm503 = vcmask 130048
        %v505 = vsel %vm503, %v494, %v411
        %v507 = vsel %vm503, %v496, %v413
        %v509 = vsel %vm503, %v498, %v415
        %v511 = vsel %vm503, %v500, %v417
        %v513 = vsel %vm503, %v502, %v419
        %vm514 = vcmask 162816
        %v516 = vsel %vm514, %v505, %v441
        %v518 = vsel %vm514, %v507, %v443
        %v520 = vsel %vm514, %v509, %v445
        %v522 = vsel %vm514, %v511, %v447
        %v524 = vsel %vm514, %v513, %v449
        %vm525 = vcmask 195584
        %v527 = vsel %vm525, %v516, %v461
        %v529 = vsel %vm525, %v518, %v463
        %v531 = vsel %vm525, %v520, %v465
        %v533 = vsel %vm525, %v522, %v467
        %v535 = vsel %vm525, %v524, %v469
        %v536 = vld [vmem:[%s1] sm:$0xf]
        %v537 = vld [vmem:[%s1 + $0x4] sm:$0xf]
        %v538 = vld [vmem:[%s1 + $0x8] sm:$0xf]
        %v539 = vld [vmem:[%s1 + $0xc] sm:$0x3]
        %v540 = vld [vmem:[%s4] sm:$0x1]
        %v541 = vlaneseq
        %v542 = vshrl.u32 %v541, 7
        %v543 = vsub.s32 0, %v542
        %v544 = vrot.slane %v540, %v543
        %v549 = vunpack.c.l.b16 %v536
        %v550 = vunpack.c.l.b16 %v537
        %v551 = vunpack.c.l.b16 %v538
        %v552 = vunpack.c.l.b16 %v539
        %v553 = vpack.c.b16 %v550, %v549
        %v554 = vpack.c.b16 %v552, %v551
        %vm556 = vcmask 228352
        %v557 = vsel %vm556, %v527, 0
        %v559 = vsel %vm556, %v529, 0
        %v561 = vsel %vm556, %v531, 0
        %v563 = vsel %vm556, %v533, 0
        %v565 = vsel %vm556, %v535, 0
        %vm567 = vcmask 1045504
        %v569 = vsel %vm567, %v554, 0
        %571 = vmatprep.subr.bf16.mxu0 0
        %572 = vmatpush1.bf16.msra.mxu0 %v553
        %573 = vmatprep.subr.bf16.mxu0 0
        %574 = vmatpush1.bf16.msra.mxu0 %v569
        %575 = vmatprep.subr.bf16.mxu0 0
        %576 = vmatpush1.bf16.msra.mxu0 0
        %577 = vmatprep.subr.bf16.mxu0 0
        %578 = vmatpush1.bf16.msra.mxu0 0
        %579 = vmatprep.subr.bf16.mxu0 0
        %580 = vmatpush1.bf16.msra.mxu0 0
        %581 = vmatprep.subr.bf16.mxu0 0
        %582 = vmatpush1.bf16.msra.mxu0 0
        %583 = vmatprep.subr.bf16.mxu0 0
        %584 = vmatpush1.bf16.msra.mxu0 0
        %585 = vmatprep.subr.bf16.mxu0 0
        %586 = vmatpush1.bf16.msra.mxu0 0
        %587 = vmatprep.subr.bf16.mxu0 0
        %588 = vmatpush1.bf16.msra.mxu0 0
        %589 = vmatprep.subr.bf16.mxu0 0
        %590 = vmatpush1.bf16.msra.mxu0 0
        %591 = vmatprep.subr.bf16.mxu0 0
        %592 = vmatpush1.bf16.msra.mxu0 0
        %593 = vmatprep.subr.bf16.mxu0 0
        %594 = vmatpush1.bf16.msra.mxu0 0
        %595 = vmatprep.subr.bf16.mxu0 0
        %596 = vmatpush1.bf16.msra.mxu0 0
        %597 = vmatprep.subr.bf16.mxu0 0
        %598 = vmatpush1.bf16.msra.mxu0 0
        %599 = vmatprep.subr.bf16.mxu0 0
        %600 = vmatpush1.bf16.msra.mxu0 0
        %601 = vmatprep.subr.bf16.mxu0 0
        %602 = vmatpush1.bf16.msra.mxu0 0
        %603 = vmatprep.mubr.bf16.mxu0 0
        %604 = vmatmul.mubr.bf16.gmra.mrb[0].mxu0 %v557
        %v605 = vpop.f32.mrb[0].mxu0
        %v606 = vadd.f32 %v544, %v605
        %v607 = vpop.f32.mrb[0].mxu0
        %v608 = vpop.f32.mrb[0].mxu0
        %v609 = vadd.f32 %v544, %v608
        %v610 = vpop.f32.mrb[0].mxu0
        %611 = vmatprep.mubr.bf16.mxu0 0
        %612 = vmatmul.mubr.bf16.gmra.mrb[0].mxu0 %v559
        %v613 = vpop.f32.mrb[0].mxu0
        %v614 = vadd.f32 %v544, %v613
        %v615 = vpop.f32.mrb[0].mxu0
        %v616 = vpop.f32.mrb[0].mxu0
        %v617 = vadd.f32 %v544, %v616
        %v618 = vpop.f32.mrb[0].mxu0
        %619 = vmatprep.mubr.bf16.mxu0 0
        %620 = vmatmul.mubr.bf16.gmra.mrb[0].mxu0 %v561
        %v621 = vpop.f32.mrb[0].mxu0
        %v622 = vadd.f32 %v544, %v621
        %v623 = vpop.f32.mrb[0].mxu0
        %v624 = vpop.f32.mrb[0].mxu0
        %v625 = vadd.f32 %v544, %v624
        %v626 = vpop.f32.mrb[0].mxu0
        %627 = vmatprep.mubr.bf16.mxu0 0
        %628 = vmatmul.mubr.bf16.gmra.mrb[0].mxu0 %v563
        %v629 = vpop.f32.mrb[0].mxu0
        %v630 = vadd.f32 %v544, %v629
        %v631 = vpop.f32.mrb[0].mxu0
        %v632 = vpop.f32.mrb[0].mxu0
        %v633 = vadd.f32 %v544, %v632
        %v634 = vpop.f32.mrb[0].mxu0
        %635 = vmatprep.mubr.bf16.mxu0 0
        %636 = vmatmul.mubr.bf16.gmra.mrb[0].mxu0 %v565
        %v637 = vpop.f32.mrb[0].mxu0
        %v638 = vadd.f32 %v544, %v637
        %v639 = vpop.f32.mrb[0].mxu0
        %v640 = vpop.f32.mrb[0].mxu0
        %v641 = vpop.f32.mrb[0].mxu0
        %642 = vdwg.mxu0
        %v643 = vmax.f32 %v606, 0.0
        %v644 = vmax.f32 %v609, 0.0
        %v645 = vmax.f32 %v614, 0.0
        %v646 = vmax.f32 %v617, 0.0
        %v647 = vmax.f32 %v622, 0.0
        %v648 = vmax.f32 %v625, 0.0
        %v649 = vmax.f32 %v630, 0.0
        %v650 = vmax.f32 %v633, 0.0
        %v651 = vmax.f32 %v638, 0.0
        %v652 = vlaneseq
        %v653 = vshrl.u32 %v652, 7
        %v654 = vadd.s32 %v653, 8
        %v655 = vadd.s32 %v653, 16
        %v656 = vadd.s32 %v653, 24
        %v657 = vadd.s32 %v653, 32
        %v658 = vadd.s32 %v653, 40
        %v659 = vadd.s32 %v653, 48
        %v660 = vadd.s32 %v653, 56
        %v661 = vadd.s32 %v653, 64
        %v662 = vstv %s254
        %v663 = vadd.s32 %v662, %v653
        %v664 = vadd.s32 %v662, %v654
        %v665 = vadd.s32 %v662, %v655
        %v666 = vadd.s32 %v662, %v656
        %v667 = vadd.s32 %v662, %v657
        %v668 = vadd.s32 %v662, %v658
        %v669 = vadd.s32 %v662, %v659
        %v670 = vadd.s32 %v662, %v660
        %v671 = vadd.s32 %v662, %v661
        %v672 = vsub.s32 %v663, 3
        %v673 = vsub.s32 %v664, 3
        %v674 = vsub.s32 %v665, 3
        %v675 = vsub.s32 %v666, 3
        %v676 = vsub.s32 %v667, 3
        %v677 = vsub.s32 %v668, 3
        %v678 = vsub.s32 %v669, 3
        %v679 = vsub.s32 %v670, 3
        %v680 = vsub.s32 %v671, 3
        %vm681 = vcmp.ge.s32.totalorder %v672, 0
        %vm682 = vcmp.ge.s32.totalorder %v673, 0
        %vm683 = vcmp.ge.s32.totalorder %v674, 0
        %vm684 = vcmp.ge.s32.totalorder %v675, 0
        %vm685 = vcmp.ge.s32.totalorder %v676, 0
        %vm686 = vcmp.ge.s32.totalorder %v677, 0
        %vm687 = vcmp.ge.s32.totalorder %v678, 0
        %vm688 = vcmp.ge.s32.totalorder %v679, 0
        %vm689 = vcmp.ge.s32.totalorder %v680, 0
        %vm690 = vcmp.lt.s32.totalorder %v672, 256
        %vm691 = vcmp.lt.s32.totalorder %v673, 256
        %vm692 = vcmp.lt.s32.totalorder %v674, 256
        %vm693 = vcmp.lt.s32.totalorder %v675, 256
        %vm694 = vcmp.lt.s32.totalorder %v676, 256
        %vm695 = vcmp.lt.s32.totalorder %v677, 256
        %vm696 = vcmp.lt.s32.totalorder %v678, 256
        %vm697 = vcmp.lt.s32.totalorder %v679, 256
        %vm698 = vcmp.lt.s32.totalorder %v680, 256
        %vm699 = vmand %vm681, %vm690
        %vm700 = vmand %vm682, %vm691
        %vm701 = vmand %vm683, %vm692
        %vm702 = vmand %vm684, %vm693
        %vm703 = vmand %vm685, %vm694
        %vm704 = vmand %vm686, %vm695
        %vm705 = vmand %vm687, %vm696
        %vm706 = vmand %vm688, %vm697
        %vm707 = vmand %vm689, %vm698
        %v708 = vsel %vm699, 1, 0
        %v709 = vsel %vm700, 1, 0
        %v710 = vsel %vm701, 1, 0
        %v711 = vsel %vm702, 1, 0
        %v712 = vsel %vm703, 1, 0
        %v713 = vsel %vm704, 1, 0
        %v714 = vsel %vm705, 1, 0
        %v715 = vsel %vm706, 1, 0
        %v716 = vsel %vm707, 1, 0
        %vm717 = vcmp.eq.s32.totalorder %v708, 1
        %vm718 = vcmp.eq.s32.totalorder %v709, 1
        %vm719 = vcmp.eq.s32.totalorder %v710, 1
        %vm720 = vcmp.eq.s32.totalorder %v711, 1
        %vm721 = vcmp.eq.s32.totalorder %v712, 1
        %vm722 = vcmp.eq.s32.totalorder %v713, 1
        %vm723 = vcmp.eq.s32.totalorder %v714, 1
        %vm724 = vcmp.eq.s32.totalorder %v715, 1
        %vm725 = vcmp.eq.s32.totalorder %v716, 1
        %v726 = vsel %vm717, %v643, 0.0
        %v727 = vsel %vm718, %v644, 0.0
        %v728 = vsel %vm719, %v645, 0.0
        %v729 = vsel %vm720, %v646, 0.0
        %v730 = vsel %vm721, %v647, 0.0
        %v731 = vsel %vm722, %v648, 0.0
        %v732 = vsel %vm723, %v649, 0.0
        %v733 = vsel %vm724, %v650, 0.0
        %v734 = vsel %vm725, %v651, 0.0
        %v735 = vpack.c.bf16 %v727, %v726
        %v736 = vpack.c.bf16 %v729, %v728
        %v737 = vpack.c.bf16 %v731, %v730
        %v738 = vpack.c.bf16 %v733, %v732
        %v739 = vpack.c.bf16 %v734, %v734
        %v741 = vshrl.u32 %v735, 16
        %v743 = vshll.u32 %v735, 16
        %v745 = vrot.slane %v743, 1
        %v746 = vor.u32 %v741, %v745
        %v748 = vshll.u32 %v736, 16
        %v750 = vrot.slane %v748, 1
        %v751 = vsel %vm292, %v746, %v750
        %v752 = vshrl.u32 %v736, 16
        %v754 = vor.u32 %v752, %v750
        %v756 = vshll.u32 %v737, 16
        %v758 = vrot.slane %v756, 1
        %v759 = vsel %vm292, %v754, %v758
        %v760 = vshrl.u32 %v737, 16
        %v762 = vor.u32 %v760, %v758
        %v764 = vshll.u32 %v738, 16
        %v766 = vrot.slane %v764, 1
        %v767 = vsel %vm292, %v762, %v766
        %v768 = vshrl.u32 %v738, 16
        %v770 = vor.u32 %v768, %v766
        %v772 = vshll.u32 %v739, 16
        %v774 = vrot.slane %v772, 1
        %v775 = vsel %vm292, %v770, %v774
        %v785 = vrot.slane %v735, 1
        %v786 = vrot.slane %v736, 1
        %v787 = vsel %vm342, %v785, %v786
        %v788 = vrot.slane %v737, 1
        %v789 = vsel %vm342, %v786, %v788
        %v790 = vrot.slane %v738, 1
        %v791 = vsel %vm342, %v788, %v790
        %v792 = vrot.slane %v739, 1
        %v793 = vsel %vm342, %v790, %v792
        %v798 = vrot.slane %v741, 1
        %v799 = vrot.slane %v743, 2
        %v800 = vor.u32 %v798, %v799
        %v801 = vrot.slane %v752, 1
        %v802 = vrot.slane %v748, 2
        %v803 = vor.u32 %v801, %v802
        %v804 = vsel %vm365, %v800, %v803
        %v805 = vrot.slane %v760, 1
        %v806 = vrot.slane %v756, 2
        %v807 = vor.u32 %v805, %v806
        %v808 = vsel %vm365, %v803, %v807
        %v809 = vrot.slane %v768, 1
        %v810 = vrot.slane %v764, 2
        %v811 = vor.u32 %v809, %v810
        %v812 = vsel %vm365, %v807, %v811
        %v813 = vshrl.u32 %v739, 16
        %v815 = vrot.slane %v813, 1
        %v816 = vrot.slane %v772, 2
        %v817 = vor.u32 %v815, %v816
        %v818 = vsel %vm365, %v811, %v817
        %v823 = vrot.slane %v735, 2
        %v824 = vrot.slane %v736, 2
        %v825 = vsel %vm400, %v823, %v824
        %v826 = vrot.slane %v737, 2
        %v827 = vsel %vm400, %v824, %v826
        %v828 = vrot.slane %v738, 2
        %v829 = vsel %vm400, %v826, %v828
        %v830 = vrot.slane %v739, 2
        %v831 = vsel %vm400, %v828, %v830
        %v836 = vrot.slane %v741, 2
        %v837 = vrot.slane %v743, 3
        %v838 = vor.u32 %v836, %v837
        %v839 = vrot.slane %v752, 2
        %v840 = vrot.slane %v748, 3
        %v841 = vor.u32 %v839, %v840
        %v842 = vsel %vm420, %v838, %v841
        %v843 = vrot.slane %v760, 2
        %v844 = vrot.slane %v756, 3
        %v845 = vor.u32 %v843, %v844
        %v846 = vsel %vm420, %v841, %v845
        %v847 = vrot.slane %v768, 2
        %v848 = vrot.slane %v764, 3
        %v849 = vor.u32 %v847, %v848
        %v850 = vsel %vm420, %v845, %v849
        %v851 = vrot.slane %v813, 2
        %v852 = vrot.slane %v772, 3
        %v853 = vor.u32 %v851, %v852
        %v854 = vsel %vm420, %v849, %v853
        %v859 = vrot.slane %v735, 3
        %v860 = vrot.slane %v736, 3
        %v861 = vsel %vm450, %v859, %v860
        %v862 = vrot.slane %v737, 3
        %v863 = vsel %vm450, %v860, %v862
        %v864 = vrot.slane %v738, 3
        %v865 = vsel %vm450, %v862, %v864
        %v866 = vrot.slane %v739, 3
        %v867 = vsel %vm450, %v864, %v866
        %v872 = vld [vmem:[#allocation2] sm:$0xf]
        %v873 = vld [vmem:[#allocation2 + $0x4] sm:$0xf]
        %v874 = vld [vmem:[#allocation2 + $0x8] sm:$0xf]
        %v875 = vld [vmem:[#allocation2 + $0xc] sm:$0xf]
        %v876 = vld [vmem:[#allocation2 + $0x10] sm:$0xf]
        %v877 = vld [vmem:[#allocation2 + $0x14] sm:$0xf]
        %v878 = vld [vmem:[#allocation2 + $0x18] sm:$0xf]
        %v879 = vld [vmem:[#allocation2 + $0x1c] sm:$0xf]
        %v880 = vld [vmem:[#allocation2 + $0x20] sm:$0xf]
        %v881 = vld [vmem:[#allocation2 + $0x24] sm:$0xf]
        %v882 = vld [vmem:[#allocation2 + $0x28] sm:$0xf]
        %v883 = vld [vmem:[#allocation2 + $0x2c] sm:$0xf]
        %v884 = vld [vmem:[#allocation2 + $0x30] sm:$0xf]
        %v885 = vld [vmem:[#allocation2 + $0x34] sm:$0xf]
        %v886 = vld [vmem:[#allocation2 + $0x38] sm:$0xf]
        %v887 = vld [vmem:[#allocation2 + $0x3c] sm:$0xf]
        %v888 = vld [vmem:[#allocation2 + $0x40] sm:$0xf]
        %v889 = vld [vmem:[#allocation2 + $0x44] sm:$0xf]
        %v890 = vld [vmem:[#allocation2 + $0x48] sm:$0xf]
        %v891 = vld [vmem:[#allocation2 + $0x4c] sm:$0xf]
        %v892 = vld [vmem:[#allocation2 + $0x50] sm:$0xf]
        %v893 = vld [vmem:[#allocation2 + $0x54] sm:$0xf]
        %v894 = vld [vmem:[#allocation2 + $0x58] sm:$0xf]
        %v895 = vld [vmem:[#allocation2 + $0x5c] sm:$0xf]
        %v896 = vld [vmem:[#allocation2 + $0x60] sm:$0xf]
        %v897 = vld [vmem:[#allocation2 + $0x64] sm:$0xf]
        %v898 = vld [vmem:[#allocation2 + $0x68] sm:$0xf]
        %v899 = vld [vmem:[#allocation2 + $0x6c] sm:$0xf]
        %v900 = vld [vmem:[#allocation2 + $0x70] sm:$0xf]
        %v901 = vld [vmem:[#allocation2 + $0x74] sm:$0xf]
        %v902 = vld [vmem:[#allocation2 + $0x78] sm:$0xf]
        %v903 = vld [vmem:[#allocation2 + $0x7c] sm:$0xf]
        %v904 = vld [vmem:[#allocation2 + $0x80] sm:$0xf]
        %v905 = vld [vmem:[#allocation2 + $0x84] sm:$0xf]
        %v906 = vld [vmem:[#allocation2 + $0x88] sm:$0xf]
        %v907 = vld [vmem:[#allocation2 + $0x8c] sm:$0xf]
        %v908 = vld [vmem:[#allocation2 + $0x90] sm:$0xf]
        %v909 = vld [vmem:[#allocation2 + $0x94] sm:$0xf]
        %v910 = vld [vmem:[#allocation2 + $0x98] sm:$0xf]
        %v911 = vld [vmem:[#allocation2 + $0x9c] sm:$0xf]
        %v912 = vld [vmem:[#allocation2 + $0xa0] sm:$0xf]
        %v913 = vld [vmem:[#allocation2 + $0xa4] sm:$0xf]
        %v914 = vld [vmem:[#allocation2 + $0xa8] sm:$0xf]
        %v915 = vld [vmem:[#allocation2 + $0xac] sm:$0xf]
        %v916 = vld [vmem:[#allocation2 + $0xb0] sm:$0xf]
        %v917 = vld [vmem:[#allocation2 + $0xb4] sm:$0xf]
        %v918 = vld [vmem:[#allocation2 + $0xb8] sm:$0xf]
        %v919 = vld [vmem:[#allocation2 + $0xbc] sm:$0xf]
        %v920 = vld [vmem:[#allocation2 + $0xc0] sm:$0xf]
        %v921 = vld [vmem:[#allocation2 + $0xc4] sm:$0xf]
        %v922 = vld [vmem:[#allocation2 + $0xc8] sm:$0xf]
        %v923 = vld [vmem:[#allocation2 + $0xcc] sm:$0xf]
        %v924 = vld [vmem:[#allocation2 + $0xd0] sm:$0xf]
        %v925 = vld [vmem:[#allocation2 + $0xd4] sm:$0xf]
        %v926 = vld [vmem:[#allocation2 + $0xd8] sm:$0xf]
        %v927 = vld [vmem:[#allocation2 + $0xdc] sm:$0xf]
        %v928 = vld [vmem:[#allocation2 + $0xe0] sm:$0xf]
        %v929 = vld [vmem:[#allocation2 + $0xe4] sm:$0xf]
        %v930 = vld [vmem:[#allocation2 + $0xe8] sm:$0xf]
        %v931 = vld [vmem:[#allocation2 + $0xec] sm:$0xf]
        %v932 = vld [vmem:[#allocation2 + $0xf0] sm:$0xf]
        %v933 = vld [vmem:[#allocation2 + $0xf4] sm:$0xf]
        %v934 = vld [vmem:[#allocation2 + $0xf8] sm:$0xf]
        %v935 = vld [vmem:[#allocation2 + $0xfc] sm:$0xf]
        %v936 = vld [vmem:[#allocation2 + $0x100] sm:$0xf]
        %v937 = vld [vmem:[#allocation2 + $0x104] sm:$0xf]
        %v938 = vld [vmem:[#allocation2 + $0x108] sm:$0xf]
        %v939 = vld [vmem:[#allocation2 + $0x10c] sm:$0xf]
        %v940 = vld [vmem:[#allocation2 + $0x110] sm:$0xf]
        %v941 = vld [vmem:[#allocation2 + $0x114] sm:$0xf]
        %v942 = vld [vmem:[#allocation2 + $0x118] sm:$0xf]
        %v943 = vld [vmem:[#allocation2 + $0x11c] sm:$0xf]
        %v944 = vld [vmem:[#allocation2 + $0x120] sm:$0xf]
        %v945 = vld [vmem:[#allocation2 + $0x124] sm:$0xf]
        %v946 = vld [vmem:[#allocation2 + $0x128] sm:$0xf]
        %v947 = vld [vmem:[#allocation2 + $0x12c] sm:$0xf]
        %v948 = vld [vmem:[#allocation2 + $0x130] sm:$0xf]
        %v949 = vld [vmem:[#allocation2 + $0x134] sm:$0xf]
        %v950 = vld [vmem:[#allocation2 + $0x138] sm:$0xf]
        %v951 = vld [vmem:[#allocation2 + $0x13c] sm:$0xf]
        %v952 = vld [vmem:[#allocation2 + $0x140] sm:$0xf]
        %v953 = vld [vmem:[#allocation2 + $0x144] sm:$0xf]
        %v954 = vld [vmem:[#allocation2 + $0x148] sm:$0xf]
        %v955 = vld [vmem:[#allocation2 + $0x14c] sm:$0xf]
        %v956 = vld [vmem:[#allocation2 + $0x150] sm:$0xf]
        %v957 = vld [vmem:[#allocation2 + $0x154] sm:$0xf]
        %v958 = vld [vmem:[#allocation2 + $0x158] sm:$0xf]
        %v959 = vld [vmem:[#allocation2 + $0x15c] sm:$0xf]
        %v960 = vld [vmem:[#allocation2 + $0x160] sm:$0xf]
        %v961 = vld [vmem:[#allocation2 + $0x164] sm:$0xf]
        %v962 = vld [vmem:[#allocation2 + $0x168] sm:$0xf]
        %v963 = vld [vmem:[#allocation2 + $0x16c] sm:$0xf]
        %v964 = vld [vmem:[#allocation2 + $0x170] sm:$0xf]
        %v965 = vld [vmem:[#allocation2 + $0x174] sm:$0xf]
        %v966 = vld [vmem:[#allocation2 + $0x178] sm:$0xf]
        %v967 = vld [vmem:[#allocation2 + $0x17c] sm:$0xf]
        %v968 = vld [vmem:[#allocation2 + $0x180] sm:$0xf]
        %v969 = vld [vmem:[#allocation2 + $0x184] sm:$0xf]
        %v970 = vld [vmem:[#allocation2 + $0x188] sm:$0xf]
        %v971 = vld [vmem:[#allocation2 + $0x18c] sm:$0xf]
        %v972 = vld [vmem:[#allocation2 + $0x190] sm:$0xf]
        %v973 = vld [vmem:[#allocation2 + $0x194] sm:$0xf]
        %v974 = vld [vmem:[#allocation2 + $0x198] sm:$0xf]
        %v975 = vld [vmem:[#allocation2 + $0x19c] sm:$0xf]
        %v976 = vld [vmem:[#allocation2 + $0x1a0] sm:$0xf]
        %v977 = vld [vmem:[#allocation2 + $0x1a4] sm:$0xf]
        %v978 = vld [vmem:[#allocation2 + $0x1a8] sm:$0xf]
        %v979 = vld [vmem:[#allocation2 + $0x1ac] sm:$0xf]
        %v980 = vld [vmem:[#allocation2 + $0x1b0] sm:$0xf]
        %v981 = vld [vmem:[#allocation2 + $0x1b4] sm:$0xf]
        %v982 = vld [vmem:[#allocation2 + $0x1b8] sm:$0xf]
        %v983 = vld [vmem:[#allocation2 + $0x1bc] sm:$0xf]
        %v984 = vld [vmem:[%s3] sm:$0x3]
        %v985 = vrot.slane %v291, 3
        %v986 = vsel %vm450, %v456, %v985
        %v988 = vsel %vm470, %v453, 0
        %v991 = vsel %vm470, %v455, 0
        %v994 = vsel %vm470, %v457, 0
        %v997 = vsel %vm470, %v986, 0
        %vm999 = vcmask 1041408
        %v1001 = vsel %vm999, %v984, 0
        %1003 = vmatprep.subr.bf16.mxu0 0
        %1004 = vmatpush1.bf16.msra.mxu0 %v1001
        %1005 = vmatprep.subr.bf16.mxu0 0
        %1006 = vmatpush1.bf16.msra.mxu0 0
        %1007 = vmatprep.subr.bf16.mxu0 0
        %1008 = vmatpush1.bf16.msra.mxu0 0
        %1009 = vmatprep.subr.bf16.mxu0 0
        %1010 = vmatpush1.bf16.msra.mxu0 0
        %1011 = vmatprep.subr.bf16.mxu0 0
        %1012 = vmatpush1.bf16.msra.mxu0 0
        %1013 = vmatprep.subr.bf16.mxu0 0
        %1014 = vmatpush1.bf16.msra.mxu0 0
        %1015 = vmatprep.subr.bf16.mxu0 0
        %1016 = vmatpush1.bf16.msra.mxu0 0
        %1017 = vmatprep.subr.bf16.mxu0 0
        %1018 = vmatpush1.bf16.msra.mxu0 0
        %1019 = vmatprep.subr.bf16.mxu0 0
        %1020 = vmatpush1.bf16.msra.mxu0 0
        %1021 = vmatprep.subr.bf16.mxu0 0
        %1022 = vmatpush1.bf16.msra.mxu0 0
        %1023 = vmatprep.subr.bf16.mxu0 0
        %1024 = vmatpush1.bf16.msra.mxu0 0
        %1025 = vmatprep.subr.bf16.mxu0 0
        %1026 = vmatpush1.bf16.msra.mxu0 0
        %1027 = vmatprep.subr.bf16.mxu0 0
        %1028 = vmatpush1.bf16.msra.mxu0 0
        %1029 = vmatprep.subr.bf16.mxu0 0
        %1030 = vmatpush1.bf16.msra.mxu0 0
        %1031 = vmatprep.subr.bf16.mxu0 0
        %1032 = vmatpush1.bf16.msra.mxu0 0
        %1033 = vmatprep.subr.bf16.mxu0 0
        %1034 = vmatpush1.bf16.msra.mxu0 0
        %1035 = vmatprep.mubr.bf16.mxu0 0
        %1036 = vmatmul.mubr.bf16.gmra.mrb[0].mxu0 %v988
        %v1037 = vpop.f32.mrb[0].mxu0
        %v1038 = vadd.f32 0.0, %v1037
        %v1039 = vpop.f32.mrb[0].mxu0
        %v1040 = vpop.f32.mrb[0].mxu0
        %v1041 = vadd.f32 0.0, %v1040
        %v1042 = vpop.f32.mrb[0].mxu0
        %1043 = vmatprep.mubr.bf16.mxu0 0
        %1044 = vmatmul.mubr.bf16.gmra.mrb[0].mxu0 %v991
        %v1045 = vpop.f32.mrb[0].mxu0
        %v1046 = vadd.f32 0.0, %v1045
        %v1047 = vpop.f32.mrb[0].mxu0
        %v1048 = vpop.f32.mrb[0].mxu0
        %v1049 = vadd.f32 0.0, %v1048
        %v1050 = vpop.f32.mrb[0].mxu0
        %1051 = vmatprep.mubr.bf16.mxu0 0
        %1052 = vmatmul.mubr.bf16.gmra.mrb[0].mxu0 %v994
        %v1053 = vpop.f32.mrb[0].mxu0
        %v1054 = vadd.f32 0.0, %v1053
        %v1055 = vpop.f32.mrb[0].mxu0
        %v1056 = vpop.f32.mrb[0].mxu0
        %v1057 = vadd.f32 0.0, %v1056
        %v1058 = vpop.f32.mrb[0].mxu0
        %1059 = vmatprep.mubr.bf16.mxu0 0
        %1060 = vmatmul.mubr.bf16.gmra.mrb[0].mxu0 %v997
        %v1061 = vpop.f32.mrb[0].mxu0
        %v1062 = vadd.f32 0.0, %v1061
        %v1063 = vpop.f32.mrb[0].mxu0
        %v1064 = vpop.f32.mrb[0].mxu0
        %v1065 = vadd.f32 0.0, %v1064
        %v1066 = vpop.f32.mrb[0].mxu0
        %1067 = vdwg.mxu0
        %v1180 = vunpack.c.l.b16 %v872
        %v1181 = vunpack.c.l.b16 %v873
        %v1182 = vunpack.c.l.b16 %v874
        %v1183 = vunpack.c.l.b16 %v875
        %v1184 = vunpack.c.l.b16 %v876
        %v1185 = vunpack.c.l.b16 %v877
        %v1186 = vunpack.c.l.b16 %v878
        %v1187 = vunpack.c.l.b16 %v879
        %v1188 = vunpack.c.l.b16 %v880
        %v1189 = vunpack.c.l.b16 %v881
        %v1190 = vunpack.c.l.b16 %v882
        %v1191 = vunpack.c.l.b16 %v883
        %v1192 = vunpack.c.l.b16 %v884
        %v1193 = vunpack.c.l.b16 %v885
        %v1194 = vunpack.c.l.b16 %v886
        %v1195 = vunpack.c.l.b16 %v887
        %v1196 = vunpack.c.l.b16 %v888
        %v1197 = vunpack.c.l.b16 %v889
        %v1198 = vunpack.c.l.b16 %v890
        %v1199 = vunpack.c.l.b16 %v891
        %v1200 = vunpack.c.l.b16 %v892
        %v1201 = vunpack.c.l.b16 %v893
        %v1202 = vunpack.c.l.b16 %v894
        %v1203 = vunpack.c.l.b16 %v895
        %v1204 = vunpack.c.l.b16 %v896
        %v1205 = vunpack.c.l.b16 %v897
        %v1206 = vunpack.c.l.b16 %v898
        %v1207 = vunpack.c.l.b16 %v899
        %v1208 = vunpack.c.l.b16 %v900
        %v1209 = vunpack.c.l.b16 %v901
        %v1210 = vunpack.c.l.b16 %v902
        %v1211 = vunpack.c.l.b16 %v903
        %v1212 = vunpack.c.l.b16 %v904
        %v1213 = vunpack.c.l.b16 %v905
        %v1214 = vunpack.c.l.b16 %v906
        %v1215 = vunpack.c.l.b16 %v907
        %v1216 = vunpack.c.l.b16 %v908
        %v1217 = vunpack.c.l.b16 %v909
        %v1218 = vunpack.c.l.b16 %v910
        %v1219 = vunpack.c.l.b16 %v911
        %v1220 = vunpack.c.l.b16 %v912
        %v1221 = vunpack.c.l.b16 %v913
        %v1222 = vunpack.c.l.b16 %v914
        %v1223 = vunpack.c.l.b16 %v915
        %v1224 = vunpack.c.l.b16 %v916
        %v1225 = vunpack.c.l.b16 %v917
        %v1226 = vunpack.c.l.b16 %v918
        %v1227 = vunpack.c.l.b16 %v919
        %v1228 = vunpack.c.l.b16 %v920
        %v1229 = vunpack.c.l.b16 %v921
        %v1230 = vunpack.c.l.b16 %v922
        %v1231 = vunpack.c.l.b16 %v923
        %v1232 = vunpack.c.l.b16 %v924
        %v1233 = vunpack.c.l.b16 %v925
        %v1234 = vunpack.c.l.b16 %v926
        %v1235 = vunpack.c.l.b16 %v927
        %v1236 = vunpack.c.l.b16 %v928
        %v1237 = vunpack.c.l.b16 %v929
        %v1238 = vunpack.c.l.b16 %v930
        %v1239 = vunpack.c.l.b16 %v931
        %v1240 = vunpack.c.l.b16 %v932
        %v1241 = vunpack.c.l.b16 %v933
        %v1242 = vunpack.c.l.b16 %v934
        %v1243 = vunpack.c.l.b16 %v935
        %v1244 = vunpack.c.l.b16 %v936
        %v1245 = vunpack.c.l.b16 %v937
        %v1246 = vunpack.c.l.b16 %v938
        %v1247 = vunpack.c.l.b16 %v939
        %v1248 = vunpack.c.l.b16 %v940
        %v1249 = vunpack.c.l.b16 %v941
        %v1250 = vunpack.c.l.b16 %v942
        %v1251 = vunpack.c.l.b16 %v943
        %v1252 = vunpack.c.l.b16 %v944
        %v1253 = vunpack.c.l.b16 %v945
        %v1254 = vunpack.c.l.b16 %v946
        %v1255 = vunpack.c.l.b16 %v947
        %v1256 = vunpack.c.l.b16 %v948
        %v1257 = vunpack.c.l.b16 %v949
        %v1258 = vunpack.c.l.b16 %v950
        %v1259 = vunpack.c.l.b16 %v951
        %v1260 = vunpack.c.l.b16 %v952
        %v1261 = vunpack.c.l.b16 %v953
        %v1262 = vunpack.c.l.b16 %v954
        %v1263 = vunpack.c.l.b16 %v955
        %v1264 = vunpack.c.l.b16 %v956
        %v1265 = vunpack.c.l.b16 %v957
        %v1266 = vunpack.c.l.b16 %v958
        %v1267 = vunpack.c.l.b16 %v959
        %v1268 = vunpack.c.l.b16 %v960
        %v1269 = vunpack.c.l.b16 %v961
        %v1270 = vunpack.c.l.b16 %v962
        %v1271 = vunpack.c.l.b16 %v963
        %v1272 = vunpack.c.l.b16 %v964
        %v1273 = vunpack.c.l.b16 %v965
        %v1274 = vunpack.c.l.b16 %v966
        %v1275 = vunpack.c.l.b16 %v967
        %v1276 = vunpack.c.l.b16 %v968
        %v1277 = vunpack.c.l.b16 %v969
        %v1278 = vunpack.c.l.b16 %v970
        %v1279 = vunpack.c.l.b16 %v971
        %v1280 = vunpack.c.l.b16 %v972
        %v1281 = vunpack.c.l.b16 %v973
        %v1282 = vunpack.c.l.b16 %v974
        %v1283 = vunpack.c.l.b16 %v975
        %v1284 = vunpack.c.l.b16 %v976
        %v1285 = vunpack.c.l.b16 %v977
        %v1286 = vunpack.c.l.b16 %v978
        %v1287 = vunpack.c.l.b16 %v979
        %v1288 = vunpack.c.l.b16 %v980
        %v1289 = vunpack.c.l.b16 %v981
        %v1290 = vunpack.c.l.b16 %v982
        %v1291 = vunpack.c.l.b16 %v983
        %v1292 = vpack.c.b16 %v1181, %v1180
        %v1293 = vpack.c.b16 %v1183, %v1182
        %v1294 = vpack.c.b16 %v1185, %v1184
        %v1295 = vpack.c.b16 %v1187, %v1186
        %v1296 = vpack.c.b16 %v1189, %v1188
        %v1297 = vpack.c.b16 %v1191, %v1190
        %v1298 = vpack.c.b16 %v1193, %v1192
        %v1299 = vpack.c.b16 %v1195, %v1194
        %v1300 = vpack.c.b16 %v1197, %v1196
        %v1301 = vpack.c.b16 %v1199, %v1198
        %v1302 = vpack.c.b16 %v1201, %v1200
        %v1303 = vpack.c.b16 %v1203, %v1202
        %v1304 = vpack.c.b16 %v1205, %v1204
        %v1305 = vpack.c.b16 %v1207, %v1206
        %v1306 = vpack.c.b16 %v1209, %v1208
        %v1307 = vpack.c.b16 %v1211, %v1210
        %v1308 = vpack.c.b16 %v1213, %v1212
        %v1309 = vpack.c.b16 %v1215, %v1214
        %v1310 = vpack.c.b16 %v1217, %v1216
        %v1311 = vpack.c.b16 %v1219, %v1218
        %v1312 = vpack.c.b16 %v1221, %v1220
        %v1313 = vpack.c.b16 %v1223, %v1222
        %v1314 = vpack.c.b16 %v1225, %v1224
        %v1315 = vpack.c.b16 %v1227, %v1226
        %v1316 = vpack.c.b16 %v1229, %v1228
        %v1317 = vpack.c.b16 %v1231, %v1230
        %v1318 = vpack.c.b16 %v1233, %v1232
        %v1319 = vpack.c.b16 %v1235, %v1234
        %v1320 = vpack.c.b16 %v1237, %v1236
        %v1321 = vpack.c.b16 %v1239, %v1238
        %v1322 = vpack.c.b16 %v1241, %v1240
        %v1323 = vpack.c.b16 %v1243, %v1242
        %v1324 = vpack.c.b16 %v1245, %v1244
        %v1325 = vpack.c.b16 %v1247, %v1246
        %v1326 = vpack.c.b16 %v1249, %v1248
        %v1327 = vpack.c.b16 %v1251, %v1250
        %v1328 = vpack.c.b16 %v1253, %v1252
        %v1329 = vpack.c.b16 %v1255, %v1254
        %v1330 = vpack.c.b16 %v1257, %v1256
        %v1331 = vpack.c.b16 %v1259, %v1258
        %v1332 = vpack.c.b16 %v1261, %v1260
        %v1333 = vpack.c.b16 %v1263, %v1262
        %v1334 = vpack.c.b16 %v1265, %v1264
        %v1335 = vpack.c.b16 %v1267, %v1266
        %v1336 = vpack.c.b16 %v1269, %v1268
        %v1337 = vpack.c.b16 %v1271, %v1270
        %v1338 = vpack.c.b16 %v1273, %v1272
        %v1339 = vpack.c.b16 %v1275, %v1274
        %v1340 = vpack.c.b16 %v1277, %v1276
        %v1341 = vpack.c.b16 %v1279, %v1278
        %v1342 = vpack.c.b16 %v1281, %v1280
        %v1343 = vpack.c.b16 %v1283, %v1282
        %v1344 = vpack.c.b16 %v1285, %v1284
        %v1345 = vpack.c.b16 %v1287, %v1286
        %v1346 = vpack.c.b16 %v1289, %v1288
        %v1347 = vpack.c.b16 %v1291, %v1290
        %1404 = vmatprep.subr.bf16.mxu0 0
        %1405 = vmatpush1.bf16.msra.mxu0 %v1292
        %1406 = vmatprep.subr.bf16.mxu0 0
        %1407 = vmatpush1.bf16.msra.mxu0 %v1293
        %1408 = vmatprep.subr.bf16.mxu0 0
        %1409 = vmatpush1.bf16.msra.mxu0 %v1294
        %1410 = vmatprep.subr.bf16.mxu0 0
        %1411 = vmatpush1.bf16.msra.mxu0 %v1295
        %1412 = vmatprep.subr.bf16.mxu0 0
        %1413 = vmatpush1.bf16.msra.mxu0 %v1296
        %1414 = vmatprep.subr.bf16.mxu0 0
        %1415 = vmatpush1.bf16.msra.mxu0 %v1297
        %1416 = vmatprep.subr.bf16.mxu0 0
        %1417 = vmatpush1.bf16.msra.mxu0 %v1298
        %1418 = vmatprep.subr.bf16.mxu0 0
        %1419 = vmatpush1.bf16.msra.mxu0 %v1299
        %1420 = vmatprep.subr.bf16.mxu0 0
        %1421 = vmatpush1.bf16.msra.mxu0 %v1300
        %1422 = vmatprep.subr.bf16.mxu0 0
        %1423 = vmatpush1.bf16.msra.mxu0 %v1301
        %1424 = vmatprep.subr.bf16.mxu0 0
        %1425 = vmatpush1.bf16.msra.mxu0 %v1302
        %1426 = vmatprep.subr.bf16.mxu0 0
        %1427 = vmatpush1.bf16.msra.mxu0 %v1303
        %1428 = vmatprep.subr.bf16.mxu0 0
        %1429 = vmatpush1.bf16.msra.mxu0 %v1304
        %1430 = vmatprep.subr.bf16.mxu0 0
        %1431 = vmatpush1.bf16.msra.mxu0 %v1305
        %1432 = vmatprep.subr.bf16.mxu0 0
        %1433 = vmatpush1.bf16.msra.mxu0 %v1306
        %1434 = vmatprep.subr.bf16.mxu0 0
        %1435 = vmatpush1.bf16.msra.mxu0 %v1307
        %1436 = vmatprep.mubr.bf16.mxu0 %v751
        %1437 = vmatmul.mubr.bf16.gmra.mrb[0].mxu0 %v735
        %v1438 = vpop.f32.mrb[0].mxu0
        %v1439 = vadd.f32 %v1038, %v1438
        %v1440 = vpop.f32.mrb[0].mxu0
        %v1441 = vpop.f32.mrb[0].mxu0
        %v1442 = vadd.f32 %v1041, %v1441
        %v1443 = vpop.f32.mrb[0].mxu0
        %1444 = vmatprep.mubr.bf16.mxu0 %v759
        %1445 = vmatmul.mubr.bf16.gmra.mrb[0].mxu0 %v736
        %v1446 = vpop.f32.mrb[0].mxu0
        %v1447 = vadd.f32 %v1046, %v1446
        %v1448 = vpop.f32.mrb[0].mxu0
        %v1449 = vpop.f32.mrb[0].mxu0
        %v1450 = vadd.f32 %v1049, %v1449
        %v1451 = vpop.f32.mrb[0].mxu0
        %1452 = vmatprep.mubr.bf16.mxu0 %v767
        %1453 = vmatmul.mubr.bf16.gmra.mrb[0].mxu0 %v737
        %v1454 = vpop.f32.mrb[0].mxu0
        %v1455 = vadd.f32 %v1054, %v1454
        %v1456 = vpop.f32.mrb[0].mxu0
        %v1457 = vpop.f32.mrb[0].mxu0
        %v1458 = vadd.f32 %v1057, %v1457
        %v1459 = vpop.f32.mrb[0].mxu0
        %1460 = vmatprep.mubr.bf16.mxu0 %v775
        %1461 = vmatmul.mubr.bf16.gmra.mrb[0].mxu0 %v738
        %v1462 = vpop.f32.mrb[0].mxu0
        %v1463 = vadd.f32 %v1062, %v1462
        %v1464 = vpop.f32.mrb[0].mxu0
        %v1465 = vpop.f32.mrb[0].mxu0
        %v1466 = vadd.f32 %v1065, %v1465
        %v1467 = vpop.f32.mrb[0].mxu0
        %1468 = vdwg.mxu0
        %1469 = vmatprep.subr.bf16.mxu0 0
        %1470 = vmatpush1.bf16.msra.mxu0 %v1308
        %1471 = vmatprep.subr.bf16.mxu0 0
        %1472 = vmatpush1.bf16.msra.mxu0 %v1309
        %1473 = vmatprep.subr.bf16.mxu0 0
        %1474 = vmatpush1.bf16.msra.mxu0 %v1310
        %1475 = vmatprep.subr.bf16.mxu0 0
        %1476 = vmatpush1.bf16.msra.mxu0 %v1311
        %1477 = vmatprep.subr.bf16.mxu0 0
        %1478 = vmatpush1.bf16.msra.mxu0 %v1312
        %1479 = vmatprep.subr.bf16.mxu0 0
        %1480 = vmatpush1.bf16.msra.mxu0 %v1313
        %1481 = vmatprep.subr.bf16.mxu0 0
        %1482 = vmatpush1.bf16.msra.mxu0 %v1314
        %1483 = vmatprep.subr.bf16.mxu0 0
        %1484 = vmatpush1.bf16.msra.mxu0 %v1315
        %1485 = vmatprep.subr.bf16.mxu0 0
        %1486 = vmatpush1.bf16.msra.mxu0 %v1316
        %1487 = vmatprep.subr.bf16.mxu0 0
        %1488 = vmatpush1.bf16.msra.mxu0 %v1317
        %1489 = vmatprep.subr.bf16.mxu0 0
        %1490 = vmatpush1.bf16.msra.mxu0 %v1318
        %1491 = vmatprep.subr.bf16.mxu0 0
        %1492 = vmatpush1.bf16.msra.mxu0 %v1319
        %1493 = vmatprep.subr.bf16.mxu0 0
        %1494 = vmatpush1.bf16.msra.mxu0 %v1320
        %1495 = vmatprep.subr.bf16.mxu0 0
        %1496 = vmatpush1.bf16.msra.mxu0 %v1321
        %1497 = vmatprep.subr.bf16.mxu0 0
        %1498 = vmatpush1.bf16.msra.mxu0 %v1322
        %1499 = vmatprep.subr.bf16.mxu0 0
        %1500 = vmatpush1.bf16.msra.mxu0 %v1323
        %1501 = vmatprep.mubr.bf16.mxu0 %v804
        %1502 = vmatmul.mubr.bf16.gmra.mrb[0].mxu0 %v787
        %v1503 = vpop.f32.mrb[0].mxu0
        %v1504 = vadd.f32 %v1439, %v1503
        %v1505 = vpop.f32.mrb[0].mxu0
        %v1506 = vpop.f32.mrb[0].mxu0
        %v1507 = vadd.f32 %v1442, %v1506
        %v1508 = vpop.f32.mrb[0].mxu0
        %1509 = vmatprep.mubr.bf16.mxu0 %v808
        %1510 = vmatmul.mubr.bf16.gmra.mrb[0].mxu0 %v789
        %v1511 = vpop.f32.mrb[0].mxu0
        %v1512 = vadd.f32 %v1447, %v1511
        %v1513 = vpop.f32.mrb[0].mxu0
        %v1514 = vpop.f32.mrb[0].mxu0
        %v1515 = vadd.f32 %v1450, %v1514
        %v1516 = vpop.f32.mrb[0].mxu0
        %1517 = vmatprep.mubr.bf16.mxu0 %v812
        %1518 = vmatmul.mubr.bf16.gmra.mrb[0].mxu0 %v791
        %v1519 = vpop.f32.mrb[0].mxu0
        %v1520 = vadd.f32 %v1455, %v1519
        %v1521 = vpop.f32.mrb[0].mxu0
        %v1522 = vpop.f32.mrb[0].mxu0
        %v1523 = vadd.f32 %v1458, %v1522
        %v1524 = vpop.f32.mrb[0].mxu0
        %1525 = vmatprep.mubr.bf16.mxu0 %v818
        %1526 = vmatmul.mubr.bf16.gmra.mrb[0].mxu0 %v793
        %v1527 = vpop.f32.mrb[0].mxu0
        %v1528 = vadd.f32 %v1463, %v1527
        %v1529 = vpop.f32.mrb[0].mxu0
        %v1530 = vpop.f32.mrb[0].mxu0
        %v1531 = vadd.f32 %v1466, %v1530
        %v1532 = vpop.f32.mrb[0].mxu0
        %1533 = vdwg.mxu0
        %1534 = vmatprep.subr.bf16.mxu0 0
        %1535 = vmatpush1.bf16.msra.mxu0 %v1324
        %1536 = vmatprep.subr.bf16.mxu0 0
        %1537 = vmatpush1.bf16.msra.mxu0 %v1325
        %1538 = vmatprep.subr.bf16.mxu0 0
        %1539 = vmatpush1.bf16.msra.mxu0 %v1326
        %1540 = vmatprep.subr.bf16.mxu0 0
        %1541 = vmatpush1.bf16.msra.mxu0 %v1327
        %1542 = vmatprep.subr.bf16.mxu0 0
        %1543 = vmatpush1.bf16.msra.mxu0 %v1328
        %1544 = vmatprep.subr.bf16.mxu0 0
        %1545 = vmatpush1.bf16.msra.mxu0 %v1329
        %1546 = vmatprep.subr.bf16.mxu0 0
        %1547 = vmatpush1.bf16.msra.mxu0 %v1330
        %1548 = vmatprep.subr.bf16.mxu0 0
        %1549 = vmatpush1.bf16.msra.mxu0 %v1331
        %1550 = vmatprep.subr.bf16.mxu0 0
        %1551 = vmatpush1.bf16.msra.mxu0 %v1332
        %1552 = vmatprep.subr.bf16.mxu0 0
        %1553 = vmatpush1.bf16.msra.mxu0 %v1333
        %1554 = vmatprep.subr.bf16.mxu0 0
        %1555 = vmatpush1.bf16.msra.mxu0 %v1334
        %1556 = vmatprep.subr.bf16.mxu0 0
        %1557 = vmatpush1.bf16.msra.mxu0 %v1335
        %1558 = vmatprep.subr.bf16.mxu0 0
        %1559 = vmatpush1.bf16.msra.mxu0 %v1336
        %1560 = vmatprep.subr.bf16.mxu0 0
        %1561 = vmatpush1.bf16.msra.mxu0 %v1337
        %1562 = vmatprep.subr.bf16.mxu0 0
        %1563 = vmatpush1.bf16.msra.mxu0 %v1338
        %1564 = vmatprep.subr.bf16.mxu0 0
        %1565 = vmatpush1.bf16.msra.mxu0 %v1339
        %1566 = vmatprep.mubr.bf16.mxu0 %v842
        %1567 = vmatmul.mubr.bf16.gmra.mrb[0].mxu0 %v825
        %v1568 = vpop.f32.mrb[0].mxu0
        %v1569 = vadd.f32 %v1504, %v1568
        %v1570 = vpop.f32.mrb[0].mxu0
        %v1571 = vpop.f32.mrb[0].mxu0
        %v1572 = vadd.f32 %v1507, %v1571
        %v1573 = vpop.f32.mrb[0].mxu0
        %1574 = vmatprep.mubr.bf16.mxu0 %v846
        %1575 = vmatmul.mubr.bf16.gmra.mrb[0].mxu0 %v827
        %v1576 = vpop.f32.mrb[0].mxu0
        %v1577 = vadd.f32 %v1512, %v1576
        %v1578 = vpop.f32.mrb[0].mxu0
        %v1579 = vpop.f32.mrb[0].mxu0
        %v1580 = vadd.f32 %v1515, %v1579
        %v1581 = vpop.f32.mrb[0].mxu0
        %1582 = vmatprep.mubr.bf16.mxu0 %v850
        %1583 = vmatmul.mubr.bf16.gmra.mrb[0].mxu0 %v829
        %v1584 = vpop.f32.mrb[0].mxu0
        %v1585 = vadd.f32 %v1520, %v1584
        %v1586 = vpop.f32.mrb[0].mxu0
        %v1587 = vpop.f32.mrb[0].mxu0
        %v1588 = vadd.f32 %v1523, %v1587
        %v1589 = vpop.f32.mrb[0].mxu0
        %1590 = vmatprep.mubr.bf16.mxu0 %v854
        %1591 = vmatmul.mubr.bf16.gmra.mrb[0].mxu0 %v831
        %v1592 = vpop.f32.mrb[0].mxu0
        %v1593 = vadd.f32 %v1528, %v1592
        %v1594 = vpop.f32.mrb[0].mxu0
        %v1595 = vpop.f32.mrb[0].mxu0
        %v1596 = vadd.f32 %v1531, %v1595
        %v1597 = vpop.f32.mrb[0].mxu0
        %1598 = vdwg.mxu0
        %1599 = vmatprep.subr.bf16.mxu0 0
        %1600 = vmatpush1.bf16.msra.mxu0 %v1340
        %1601 = vmatprep.subr.bf16.mxu0 0
        %1602 = vmatpush1.bf16.msra.mxu0 %v1341
        %1603 = vmatprep.subr.bf16.mxu0 0
        %1604 = vmatpush1.bf16.msra.mxu0 %v1342
        %1605 = vmatprep.subr.bf16.mxu0 0
        %1606 = vmatpush1.bf16.msra.mxu0 %v1343
        %1607 = vmatprep.subr.bf16.mxu0 0
        %1608 = vmatpush1.bf16.msra.mxu0 %v1344
        %1609 = vmatprep.subr.bf16.mxu0 0
        %1610 = vmatpush1.bf16.msra.mxu0 %v1345
        %1611 = vmatprep.subr.bf16.mxu0 0
        %1612 = vmatpush1.bf16.msra.mxu0 %v1346
        %1613 = vmatprep.subr.bf16.mxu0 0
        %1614 = vmatpush1.bf16.msra.mxu0 %v1347
        %1615 = vmatprep.subr.bf16.mxu0 0
        %1616 = vmatpush1.bf16.msra.mxu0 0
        %1617 = vmatprep.subr.bf16.mxu0 0
        %1618 = vmatpush1.bf16.msra.mxu0 0
        %1619 = vmatprep.subr.bf16.mxu0 0
        %1620 = vmatpush1.bf16.msra.mxu0 0
        %1621 = vmatprep.subr.bf16.mxu0 0
        %1622 = vmatpush1.bf16.msra.mxu0 0
        %1623 = vmatprep.subr.bf16.mxu0 0
        %1624 = vmatpush1.bf16.msra.mxu0 0
        %1625 = vmatprep.subr.bf16.mxu0 0
        %1626 = vmatpush1.bf16.msra.mxu0 0
        %1627 = vmatprep.subr.bf16.mxu0 0
        %1628 = vmatpush1.bf16.msra.mxu0 0
        %1629 = vmatprep.subr.bf16.mxu0 0
        %1630 = vmatpush1.bf16.msra.mxu0 0
        %1631 = vmatprep.mubr.bf16.mxu0 0
        %1632 = vmatmul.mubr.bf16.gmra.mrb[0].mxu0 %v861
        %v1633 = vpop.f32.mrb[0].mxu0
        %v1634 = vadd.f32 %v1569, %v1633
        %v1635 = vpop.f32.mrb[0].mxu0
        %v1636 = vpop.f32.mrb[0].mxu0
        %v1637 = vadd.f32 %v1572, %v1636
        %v1638 = vpop.f32.mrb[0].mxu0
        %1639 = vmatprep.mubr.bf16.mxu0 0
        %1640 = vmatmul.mubr.bf16.gmra.mrb[0].mxu0 %v863
        %v1641 = vpop.f32.mrb[0].mxu0
        %v1642 = vadd.f32 %v1577, %v1641
        %v1643 = vpop.f32.mrb[0].mxu0
        %v1644 = vpop.f32.mrb[0].mxu0
        %v1645 = vadd.f32 %v1580, %v1644
        %v1646 = vpop.f32.mrb[0].mxu0
        %1647 = vmatprep.mubr.bf16.mxu0 0
        %1648 = vmatmul.mubr.bf16.gmra.mrb[0].mxu0 %v865
        %v1649 = vpop.f32.mrb[0].mxu0
        %v1650 = vadd.f32 %v1585, %v1649
        %v1651 = vpop.f32.mrb[0].mxu0
        %v1652 = vpop.f32.mrb[0].mxu0
        %v1653 = vadd.f32 %v1588, %v1652
        %v1654 = vpop.f32.mrb[0].mxu0
        %1655 = vmatprep.mubr.bf16.mxu0 0
        %1656 = vmatmul.mubr.bf16.gmra.mrb[0].mxu0 %v867
        %v1657 = vpop.f32.mrb[0].mxu0
        %v1658 = vadd.f32 %v1593, %v1657
        %v1659 = vpop.f32.mrb[0].mxu0
        %v1660 = vpop.f32.mrb[0].mxu0
        %v1661 = vadd.f32 %v1596, %v1660
        %v1662 = vpop.f32.mrb[0].mxu0
        %1663 = vdwg.mxu0
        %v1664 = vld [vmem:[%s4 + $0x1] sm:$0x1]
        %v1665 = vlaneseq
        %v1666 = vshrl.u32 %v1665, 7
        %v1667 = vsub.s32 0, %v1666
        %v1668 = vrot.slane %v1664, %v1667
        %v1669 = vadd.f32 %v1634, %v1668
        %v1670 = vadd.f32 %v1637, %v1668
        %v1671 = vadd.f32 %v1642, %v1668
        %v1672 = vadd.f32 %v1645, %v1668
        %v1673 = vadd.f32 %v1650, %v1668
        %v1674 = vadd.f32 %v1653, %v1668
        %v1675 = vadd.f32 %v1658, %v1668
        %v1676 = vadd.f32 %v1661, %v1668
        %v1677 = vmax.f32 %v1669, 0.0
        %v1678 = vmax.f32 %v1670, 0.0
        %v1679 = vmax.f32 %v1671, 0.0
        %v1680 = vmax.f32 %v1672, 0.0
        %v1681 = vmax.f32 %v1673, 0.0
        %v1682 = vmax.f32 %v1674, 0.0
        %v1683 = vmax.f32 %v1675, 0.0
        %v1684 = vmax.f32 %v1676, 0.0
        %1685 = vst [vmem:[%s246] sm:$0xff] %v1677
        %1686 = vst [vmem:[%s246 + $0x8] sm:$0xff] %v1678
        %1687 = vst [vmem:[%s246 + $0x10] sm:$0xff] %v1679
        %1688 = vst [vmem:[%s246 + $0x18] sm:$0xff] %v1680
        %1689 = vst [vmem:[%s246 + $0x20] sm:$0xff] %v1681
        %1690 = vst [vmem:[%s246 + $0x28] sm:$0xff] %v1682
        %1691 = vst [vmem:[%s246 + $0x30] sm:$0xff] %v1683
        %1692 = vst [vmem:[%s246 + $0x38] sm:$0xff] %v1684
        %s1693 = sand.u32 %s152, 1
        %s1694 = scalar_lea.sflag [#allocation4], %s1693
        %s1695 = sand.u32 %s152, 1
        %s1696 = smul.addr %s1695, 64
        %s1697 = scalar_lea.vmem [#allocation5], %s1696
        // Predicated region
        $region45: #{tpu_custom_call.1} parent=39 // pred_check
          %p1698 = pneg %p162
        $region46: #{tpu_custom_call.1} parent=39 // pred_check_branch
          %1700 = sbr.rel (%p1698) target = $region48
        $region47: #{tpu_custom_call.1} parent=39 // pred_region
          %s1701 = smul.u32 8, %s25
          %s1703 = ssub.s32 1024, 1024
          %1704 = vsyncadd %s1694, %s1703
          %s1705 = smul.addr %s24, 32
          %s1706 = sadd.s32 %s1701, %s1705
          %s1707 = smul.addr %s1706, 128
          %s1708 = scalar_lea.hbm %s5, %s1707
          %s1709 = sshll.u32 %s1697, 4
          %s1710 = int_to_ptr.vmem [resolvable:$true] %s1709
          %1715 = dma.vmem_to_hbm [thread:$0]  %s1710, 1024, %s1708, %s1694, 128, 128, 8
        $region48: #{tpu_custom_call.1} parent=39 // pred_fallthru
          _
      $region40: #{tpu_custom_call.1} parent=5 // pred_fallthru
        _
      %p1716 = scmp.le.s32.totalorder 2, %s15
      // Predicated region
      $region49: #{tpu_custom_call.1} parent=5 // pred_check
        %p1717 = pneg %p1716
      $region50: #{tpu_custom_call.1} parent=5 // pred_check_branch
        %1719 = sbr.rel (%p1717) target = $region52
      $region51: #{tpu_custom_call.1} parent=5 // pred_region
        %s1720 = ssub.s32 %s15, 2
        // Predicated region
        $region53: #{tpu_custom_call.1} parent=51 // pred_check
          %p1721 = pneg %p168
        $region54: #{tpu_custom_call.1} parent=51 // pred_check_branch
          %1723 = sbr.rel (%p1721) target = $region56
        $region55: #{tpu_custom_call.1} parent=51 // pred_region
          %s1724 = sand.u32 %s153, 1
          %s1725 = scalar_lea.sflag [#allocation4], %s1724
          %s1726 = sand.u32 %s153, 1
          %s1727 = smul.addr %s1726, 64
          %s1728 = scalar_lea.vmem [#allocation5], %s1727
          %1729 = dma.done %s1725, 1024
        $region56: #{tpu_custom_call.1} parent=51 // pred_fallthru
          _
      $region52: #{tpu_custom_call.1} parent=5 // pred_fallthru
        _
    $region6: #{tpu_custom_call.1} parent=1 // loop_footer
      %s19 = sadd.s32 1, %s15
    $region7: #{tpu_custom_call.1} parent=1 // loop_footer_branch
      %14 = sbr.rel target = $region3
    $region8: #{tpu_custom_call.1} parent=1 // loop_exit
      _
    %1730 = vsyncpa [#allocation3], 1
    %s1731 = scalar_lea.sflag [#allocation3], 1
    %1732 = vsyncpa %s1731, 1
    %1733 = vsyncpa [#allocation4], 1
    %s1734 = scalar_lea.sflag [#allocation4], 1
    %1735 = vsyncpa %s1734, 1

</llo_original>
